<compile_context>
chip_gen: v5e
topology: v5e:2x2
jax: 0.10.0
libtpu: 0.0.40
codegen_flags: <defaults>
</compile_context>

<pallas_src>
import jax
import jax.numpy as jnp
from jax.experimental import pallas as pl
from jax.experimental.pallas import tpu as pltpu

HIDDEN = 8
GRID_CELLS = 8 * 8                    # 64 board cells
MLP_HIDDEN = HIDDEN * GRID_CELLS      # 512
OUT_DIM = GRID_CELLS                  # 64
IN_PACK = 256                         # packed input lanes: [x(64), p(1), x*x(64), 0(127)]
IN_USED = 2 * GRID_CELLS + 1          # 129 meaningful lanes
OUT_PACK = 128                        # lane-dense padded output: [valid(64), 0(64)]
TM_MAX = 512                          # max rows per tile
MIN_SPLIT_B = 33                      # force >=2 tiles above this (v7x: 2 TCs)


def _cdiv(a, b):
    return (a + b - 1) // b


def _round_up(n, m):
    return ((n + m - 1) // m) * m


# ----------------------------------------------------------------------------
# Kernel: one (TM, 256) packed activation tile -> (TM, 128) output tile.
# ----------------------------------------------------------------------------
def _mlp_kernel(u_ref, w1_ref, c1_ref, w2_ref, b2_ref, w3_ref, b3_ref, o_ref):
    # Layer 1: single fused K=256 matmul (embedding lookup + bias1 folded into
    # w1_ref / c1_ref); accumulate in f32.
    z1 = jnp.dot(u_ref[...], w1_ref[...], preferred_element_type=jnp.float32)
    h1 = jnp.maximum(z1 + c1_ref[...], 0.0)                  # (TM, 512) f32
    # Layer 2
    z2 = jnp.dot(h1.astype(jnp.bfloat16), w2_ref[...],
                 preferred_element_type=jnp.float32)
    h2 = jnp.maximum(z2 + b2_ref[...], 0.0)                  # (TM, 512) f32
    # Layer 3 (output padded to 128 lanes for dense, unmasked stores)
    z3 = jnp.dot(h2.astype(jnp.bfloat16), w3_ref[...],
                 preferred_element_type=jnp.float32)
    o_ref[...] = jnp.maximum(z3 + b3_ref[...], 0.0).astype(o_ref.dtype)


# ----------------------------------------------------------------------------
# Parameter folding (done once, outside the hot path).
# ----------------------------------------------------------------------------
def fold_params(grid_emb, player_emb, w1, b1, w2, b2, w3, b3):
    """Fold embeddings + bias1 into a single layer-1 weight (exact for x in {-1,0,1})."""
    a = grid_emb[1]
    bq = 0.5 * (grid_emb[2] - grid_emb[0])                   # linear coeff
    cq = 0.5 * (grid_emb[2] + grid_emb[0]) - grid_emb[1]     # quadratic coeff
    w1r = w1.reshape(GRID_CELLS, HIDDEN, MLP_HIDDEN)          # (64, 8, 512)
    s = w1r.sum(axis=0)                                       # (8, 512)
    w_lin = jnp.einsum('h,ihk->ik', bq, w1r)                  # (64, 512)  x-linear
    w_quad = jnp.einsum('h,ihk->ik', cq, w1r)                 # (64, 512)  x-quadratic
    d_p = (player_emb[1] - player_emb[0]) @ s                 # (512,)     player delta
    c1 = a @ s + player_emb[0] @ s + b1.reshape(-1)           # (512,)     constant

    # Fused layer-1 weight, laid out to match the packed input lanes.
    w1_pack = jnp.zeros((IN_PACK, MLP_HIDDEN), jnp.float32)
    w1_pack = w1_pack.at[:GRID_CELLS].set(w_lin)               # lanes 0..63   <- x
    w1_pack = w1_pack.at[GRID_CELLS].set(d_p)                  # lane 64       <- p
    w1_pack = w1_pack.at[GRID_CELLS + 1:IN_USED].set(w_quad)   # lanes 65..128 <- x*x

    w3_pack = jnp.zeros((MLP_HIDDEN, OUT_PACK), jnp.float32).at[:, :OUT_DIM].set(w3)
    b3_pack = jnp.zeros((1, OUT_PACK), jnp.float32).at[:, :OUT_DIM].set(
        b3.reshape(1, -1))

    return (w1_pack.astype(jnp.bfloat16),
            c1.reshape(1, -1).astype(jnp.float32),
            w2.astype(jnp.bfloat16),
            b2.reshape(1, -1).astype(jnp.float32),
            w3_pack.astype(jnp.bfloat16),
            b3_pack.astype(jnp.float32))


# ----------------------------------------------------------------------------
# Forward wrapper.
# ----------------------------------------------------------------------------
@jax.jit
def mlp_forward(x, p, w1p, c1, w2, b2, w3p, b3p):
    # x: (B, 8, 8) int32 in {-1,0,1};  p: (B,) int32 in {0,1}
    B = x.shape[0]

    # Padding-aware tile selection (static at trace time).
    nb = _cdiv(B, TM_MAX)
    if nb == 1 and B >= MIN_SPLIT_B:
        nb = 2                                   # keep both v7x TensorCores busy
    tm = _round_up(_cdiv(B, nb), 16)             # 16: bf16 sublane pack
    bp = nb * tm

    xf = x.reshape(B, GRID_CELLS).astype(jnp.bfloat16)
    pf = p.reshape(B, 1).astype(jnp.bfloat16)
    # Packed lane-dense input [x, p, x*x] (x*x exact in bf16 for {-1,0,1});
    # one pad covers both the lane padding to 256 and the batch padding to bp.
    u = jnp.concatenate([xf, pf, xf * xf], axis=1)              # (B, 129)
    u = jnp.pad(u, ((0, bp - B), (0, IN_PACK - IN_USED)))       # (bp, 256)

    out = pl.pallas_call(
        _mlp_kernel,
        out_shape=jax.ShapeDtypeStruct((bp, OUT_PACK), jnp.bfloat16),
        grid=(nb,),
        in_specs=[
            pl.BlockSpec((tm, IN_PACK), lambda i: (i, 0)),             # u (streamed)
            pl.BlockSpec((IN_PACK, MLP_HIDDEN), lambda i: (0, 0)),     # W1 fused (resident)
            pl.BlockSpec((1, MLP_HIDDEN), lambda i: (0, 0)),           # C1
            pl.BlockSpec((MLP_HIDDEN, MLP_HIDDEN), lambda i: (0, 0)),  # W2 (resident)
            pl.BlockSpec((1, MLP_HIDDEN), lambda i: (0, 0)),           # b2
            pl.BlockSpec((MLP_HIDDEN, OUT_PACK), lambda i: (0, 0)),    # W3 padded
            pl.BlockSpec((1, OUT_PACK), lambda i: (0, 0)),             # b3 padded
        ],
        out_specs=pl.BlockSpec((tm, OUT_PACK), lambda i: (i, 0)),
        compiler_params=pltpu.CompilerParams(
            dimension_semantics=("parallel",),
            vmem_limit_bytes=32 * 1024 * 1024),
    )(u, w1p, c1, w2, b2, w3p, b3p)

    # Slice valid rows/columns, restore f32 output dtype of the original module.
    return out[:B, :OUT_DIM].astype(jnp.float32).reshape(B, 8, 8)


# ----------------------------------------------------------------------------
# Init + pure-JAX f32 reference (matches the PyTorch forward).
# ----------------------------------------------------------------------------
def init_params(key):
    ks = jax.random.split(key, 8)
    grid_emb = jax.random.normal(ks[0], (3, HIDDEN), jnp.float32)
    player_emb = jax.random.normal(ks[1], (2, HIDDEN), jnp.float32)

    def linear(kw, kb, fan_in, fan_out):
        bound = 1.0 / jnp.sqrt(fan_in)
        w = jax.random.uniform(kw, (fan_in, fan_out), jnp.float32, -bound, bound)
        b = jax.random.uniform(kb, (1, fan_out), jnp.float32, -bound, bound)
        return w, b

    w1, b1 = linear(ks[2], ks[3], MLP_HIDDEN, MLP_HIDDEN)
    w2, b2 = linear(ks[4], ks[5], MLP_HIDDEN, MLP_HIDDEN)
    w3, b3 = linear(ks[6], ks[7], MLP_HIDDEN, OUT_DIM)
    return grid_emb, player_emb, w1, b1, w2, b2, w3, b3


def reference_forward(x, p, grid_emb, player_emb, w1, b1, w2, b2, w3, b3):
    B = x.shape[0]
    g = jnp.take(grid_emb, (x + 1).astype(jnp.int32), axis=0)         # (B,8,8,H)
    ep = jnp.take(player_emb, p.astype(jnp.int32), axis=0)            # (B,H)
    h = (g + ep[:, None, None, :]).reshape(B, MLP_HIDDEN)
    h = jnp.maximum(h @ w1 + b1, 0.0)
    h = jnp.maximum(h @ w2 + b2, 0.0)
    h = jnp.maximum(h @ w3 + b3, 0.0)
    return h.reshape(B, 8, 8)


if __name__ == "__main__":
    key = jax.random.PRNGKey(0)
    pkey, xkey, pkey2, xkey2, pkey3 = jax.random.split(key, 5)
    raw = init_params(pkey)
    kparams = fold_params(*raw)

    # Small batch (matches module usage).
    B = 2
    x = jax.random.randint(xkey, (B, 8, 8), -1, 2, dtype=jnp.int32)   # {-1,0,1}
    p = jax.random.randint(pkey2, (B,), 0, 2, dtype=jnp.int32)        # {0,1}
    out = mlp_forward(x, p, *kparams)
    jax.block_until_ready(out)
    ref = reference_forward(x, p, *raw)
    assert out.shape == (B, 8, 8)
    # bf16 weights/activations/output (f32 accumulation) -> loosened tolerance.
    assert jnp.allclose(out, ref, atol=5e-2, rtol=5e-2), (
        f"mismatch vs reference, max abs err = {float(jnp.max(jnp.abs(out - ref)))}")

    # Larger batch exercising the multi-tile grid + batch padding path.
    B2 = 520
    x2 = jax.random.randint(xkey2, (B2, 8, 8), -1, 2, dtype=jnp.int32)
    p2 = jax.random.randint(pkey3, (B2,), 0, 2, dtype=jnp.int32)
    out2 = mlp_forward(x2, p2, *kparams)
    jax.block_until_ready(out2)
    ref2 = reference_forward(x2, p2, *raw)
    assert jnp.allclose(out2, ref2, atol=5e-2, rtol=5e-2), (
        f"mismatch vs reference (B=520), "
        f"max abs err = {float(jnp.max(jnp.abs(out2 - ref2)))}")

    print("KERNEL_OK")
</pallas_src>

<mosaic_0001>
module attributes {stable_mosaic.version = 11 : i64} {
  func.func @_mlp_kernel(%arg0: i32, %arg1: memref<16x256xbf16, #tpu.memory_space<vmem>>, %arg2: memref<256x512xbf16, #tpu.memory_space<vmem>>, %arg3: memref<1x512xf32, #tpu.memory_space<vmem>>, %arg4: memref<512x512xbf16, #tpu.memory_space<vmem>>, %arg5: memref<1x512xf32, #tpu.memory_space<vmem>>, %arg6: memref<512x128xbf16, #tpu.memory_space<vmem>>, %arg7: memref<1x128xf32, #tpu.memory_space<vmem>>, %arg8: memref<16x128xbf16, #tpu.memory_space<vmem>>) attributes {dimension_semantics = [#tpu.dimension_semantics<parallel>], iteration_bounds = array<i64: 1>, scalar_prefetch = 0 : i64, scratch_operands = 0 : i64, tpu.core_type = #tpu.core_type<tc>, window_params = [{transform_indices = @transform_0, window_bounds = array<i64: 16, 256>}, {pipeline_mode = #tpu.pipeline_mode<synchronous>, transform_indices = @transform_1, window_bounds = array<i64: 256, 512>}, {pipeline_mode = #tpu.pipeline_mode<synchronous>, transform_indices = @transform_2, window_bounds = array<i64: 1, 512>}, {pipeline_mode = #tpu.pipeline_mode<synchronous>, transform_indices = @transform_3, window_bounds = array<i64: 512, 512>}, {pipeline_mode = #tpu.pipeline_mode<synchronous>, transform_indices = @transform_4, window_bounds = array<i64: 1, 512>}, {pipeline_mode = #tpu.pipeline_mode<synchronous>, transform_indices = @transform_5, window_bounds = array<i64: 512, 128>}, {pipeline_mode = #tpu.pipeline_mode<synchronous>, transform_indices = @transform_6, window_bounds = array<i64: 1, 128>}, {transform_indices = @transform_7, window_bounds = array<i64: 16, 128>}]} {
    %c0 = arith.constant 0 : index
    %c0_0 = arith.constant 0 : index
    %0 = vector.load %arg1[%c0, %c0_0] : memref<16x256xbf16, #tpu.memory_space<vmem>>, vector<16x256xbf16>
    %c0_1 = arith.constant 0 : index
    %c0_2 = arith.constant 0 : index
    %1 = vector.load %arg2[%c0_1, %c0_2] : memref<256x512xbf16, #tpu.memory_space<vmem>>, vector<256x512xbf16>
    %cst = arith.constant dense<0.000000e+00> : vector<16x512xf32>
    %2 = tpu.matmul %0, %1, %cst {dimension_numbers = #tpu.dot_dimension_numbers<[1], [0], [0], [1], [0, 0, 1, 1], [], []>} : vector<16x256xbf16>, vector<256x512xbf16>, vector<16x512xf32> -> vector<16x512xf32>
    %c0_3 = arith.constant 0 : index
    %c0_4 = arith.constant 0 : index
    %3 = vector.load %arg3[%c0_3, %c0_4] : memref<1x512xf32, #tpu.memory_space<vmem>>, vector<1x512xf32>
    %4 = vector.broadcast %3 : vector<1x512xf32> to vector<16x512xf32>
    %5 = arith.addf %2, %4 : vector<16x512xf32>
    %cst_5 = arith.constant 0.000000e+00 : f32
    %6 = vector.broadcast %cst_5 : f32 to vector<16x512xf32>
    %7 = arith.maximumf %5, %6 : vector<16x512xf32>
    %8 = arith.truncf %7 : vector<16x512xf32> to vector<16x512xbf16>
    %c0_6 = arith.constant 0 : index
    %c0_7 = arith.constant 0 : index
    %9 = vector.load %arg4[%c0_6, %c0_7] : memref<512x512xbf16, #tpu.memory_space<vmem>>, vector<512x512xbf16>
    %cst_8 = arith.constant dense<0.000000e+00> : vector<16x512xf32>
    %10 = tpu.matmul %8, %9, %cst_8 {dimension_numbers = #tpu.dot_dimension_numbers<[1], [0], [0], [1], [0, 0, 1, 1], [], []>} : vector<16x512xbf16>, vector<512x512xbf16>, vector<16x512xf32> -> vector<16x512xf32>
    %c0_9 = arith.constant 0 : index
    %c0_10 = arith.constant 0 : index
    %11 = vector.load %arg5[%c0_9, %c0_10] : memref<1x512xf32, #tpu.memory_space<vmem>>, vector<1x512xf32>
    %12 = vector.broadcast %11 : vector<1x512xf32> to vector<16x512xf32>
    %13 = arith.addf %10, %12 : vector<16x512xf32>
    %cst_11 = arith.constant 0.000000e+00 : f32
    %14 = vector.broadcast %cst_11 : f32 to vector<16x512xf32>
    %15 = arith.maximumf %13, %14 : vector<16x512xf32>
    %16 = arith.truncf %15 : vector<16x512xf32> to vector<16x512xbf16>
    %c0_12 = arith.constant 0 : index
    %c0_13 = arith.constant 0 : index
    %17 = vector.load %arg6[%c0_12, %c0_13] : memref<512x128xbf16, #tpu.memory_space<vmem>>, vector<512x128xbf16>
    %cst_14 = arith.constant dense<0.000000e+00> : vector<16x128xf32>
    %18 = tpu.matmul %16, %17, %cst_14 {dimension_numbers = #tpu.dot_dimension_numbers<[1], [0], [0], [1], [0, 0, 1, 1], [], []>} : vector<16x512xbf16>, vector<512x128xbf16>, vector<16x128xf32> -> vector<16x128xf32>
    %c0_15 = arith.constant 0 : index
    %c0_16 = arith.constant 0 : index
    %19 = vector.load %arg7[%c0_15, %c0_16] : memref<1x128xf32, #tpu.memory_space<vmem>>, vector<1x128xf32>
    %20 = vector.broadcast %19 : vector<1x128xf32> to vector<16x128xf32>
    %21 = arith.addf %18, %20 : vector<16x128xf32>
    %cst_17 = arith.constant 0.000000e+00 : f32
    %22 = vector.broadcast %cst_17 : f32 to vector<16x128xf32>
    %23 = arith.maximumf %21, %22 : vector<16x128xf32>
    %24 = arith.truncf %23 : vector<16x128xf32> to vector<16x128xbf16>
    %c0_18 = arith.constant 0 : index
    %c0_19 = arith.constant 0 : index
    %25 = vector.load %arg8[%c0_18, %c0_19] : memref<16x128xbf16, #tpu.memory_space<vmem>>, vector<16x128xbf16>
    tpu.vector_store %arg8[%c0_18, %c0_19], %24 {strides = array<i32>} : memref<16x128xbf16, #tpu.memory_space<vmem>>, vector<16x128xbf16>,
    return
  }
  func.func @transform_0(%arg0: i32) -> (i32, i32) {
    %c0_i32 = arith.constant 0 : i32
    %c0_i32_0 = arith.constant 0 : i32
    return %arg0, %c0_i32 : i32, i32
  }
  func.func @transform_1(%arg0: i32) -> (i32, i32) {
    %c0_i32 = arith.constant 0 : i32
    %c0_i32_0 = arith.constant 0 : i32
    %c0_i32_1 = arith.constant 0 : i32
    return %c0_i32, %c0_i32_0 : i32, i32
  }
  func.func @transform_2(%arg0: i32) -> (i32, i32) {
    %c0_i32 = arith.constant 0 : i32
    %c0_i32_0 = arith.constant 0 : i32
    %c0_i32_1 = arith.constant 0 : i32
    return %c0_i32, %c0_i32_0 : i32, i32
  }
  func.func @transform_3(%arg0: i32) -> (i32, i32) {
    %c0_i32 = arith.constant 0 : i32
    %c0_i32_0 = arith.constant 0 : i32
    %c0_i32_1 = arith.constant 0 : i32
    return %c0_i32, %c0_i32_0 : i32, i32
  }
  func.func @transform_4(%arg0: i32) -> (i32, i32) {
    %c0_i32 = arith.constant 0 : i32
    %c0_i32_0 = arith.constant 0 : i32
    %c0_i32_1 = arith.constant 0 : i32
    return %c0_i32, %c0_i32_0 : i32, i32
  }
  func.func @transform_5(%arg0: i32) -> (i32, i32) {
    %c0_i32 = arith.constant 0 : i32
    %c0_i32_0 = arith.constant 0 : i32
    %c0_i32_1 = arith.constant 0 : i32
    return %c0_i32, %c0_i32_0 : i32, i32
  }
  func.func @transform_6(%arg0: i32) -> (i32, i32) {
    %c0_i32 = arith.constant 0 : i32
    %c0_i32_0 = arith.constant 0 : i32
    %c0_i32_1 = arith.constant 0 : i32
    return %c0_i32, %c0_i32_0 : i32, i32
  }
  func.func @transform_7(%arg0: i32) -> (i32, i32) {
    %c0_i32 = arith.constant 0 : i32
    %c0_i32_0 = arith.constant 0 : i32
    return %arg0, %c0_i32 : i32, i32
  }
}

</mosaic_0001>

<llo_original>
// kernel: mul.1
$region0: #{mul.1}
  #allocation0 [shape = 's32[1]{0}', space=sflag, size = 0x4, scoped, tag = 'scoped memory for mul.1']
  %s0 = inlined_call_operand.vmem [shape: bf16[2,64], index: 0, kind: input, shape index: {}, may-alias: {0,1}]
  %s1 = inlined_call_operand.vmem [shape: bf16[2,64], index: 1, kind: input, shape index: {}, may-alias: {0,1}]
  %s2 = inlined_call_operand.vmem [shape: bf16[2,64], index: 2, kind: output, shape index: {}]
  %s4 = sor.u32 3, 1
  %s5 = sand.u32 %s4, 1
  %v6 = vld [vmem:[%s0] sm:%s5]
  %v7 = vunpack.c.l.bf16 %v6
  %v8 = vunpack.c.h.bf16 %v6
  %s10 = sor.u32 3, 1
  %s11 = sand.u32 %s10, 1
  %v12 = vld [vmem:[%s1] sm:%s11]
  %v13 = vunpack.c.l.bf16 %v12
  %v14 = vunpack.c.h.bf16 %v12
  %15 = xla_tuple %v7, %v13
  %16 = xla_tuple %15
  %v17 = vmul.f32 %v7, %v13
  %18 = xla_tuple %v17
  %v19 = vpack.c.bf16 0.0, %v17
  %20 = vst [vmem:[%s2] sm:$0x1] %v19

// kernel: mlp_forward.1
$region0: #{mlp_forward.1}
  #allocation0 [shape = 'u32[]', space=smem, size = 0x4, offset = 0x4, fixed_abs, tag = 'smem constant byte address 0x4 - core index']
  #allocation1 [shape = 'u32[72,128]{1,0:T(1,128)}', space=vmem, size = 0x9000, scoped, tag = 'internal scratch']
  %s0 = inlined_call_operand.vmem [shape: bf16[16,256], index: 0, kind: input, shape index: {}]
  %s1 = inlined_call_operand.hbm [shape: bf16[256,512], index: 1, kind: input, shape index: {}]
  %s2 = inlined_call_operand.vmem [shape: f32[1,512], index: 2, kind: input, shape index: {}]
  %s3 = inlined_call_operand.hbm [shape: bf16[512,512], index: 3, kind: input, shape index: {}]
  %s4 = inlined_call_operand.vmem [shape: f32[1,512], index: 4, kind: input, shape index: {}]
  %s5 = inlined_call_operand.hbm [shape: bf16[512,128], index: 5, kind: input, shape index: {}]
  %s6 = inlined_call_operand.vmem [shape: f32[1,128], index: 6, kind: input, shape index: {}]
  %s7 = inlined_call_operand.vmem [shape: bf16[16,128], index: 7, kind: output, shape index: {}]
  %s8 = sld [smem:[#allocation0]]
  $region50: #{mlp_forward.1} parent=0
    _
  %s10 = ssub.s32 1, %s8
  %s11 = scalar_select 0, %s10, %s8
  $region1: #{mlp_forward.1} parent=0
    #allocation2 [shape = 'u8[262144]{0}', space=vmem, size = 0x40000, scoped, tag = 'input window, operand 1, single buffered']
    #allocation3 [shape = 's32[1]{0}', space=sflag, size = 0x4, scoped, tag = 'scoped memory for mlp_forward.1']
    #allocation4 [shape = 'u8[524288]{0}', space=vmem, size = 0x80000, scoped, tag = 'input window, operand 3, single buffered']
    #allocation5 [shape = 's32[1]{0}', space=sflag, size = 0x4, scoped, tag = 'scoped memory for mlp_forward.1']
    #allocation6 [shape = 'u8[131072]{0}', space=vmem, size = 0x20000, scoped, tag = 'input window, operand 5, single buffered']
    %12 = vsyncpa [#allocation3], 0
    %13 = vsyncpa [#allocation5], 0
    // Predicated region
    $region2: #{mlp_forward.1} parent=1 // pred_check
      _
    $region3: #{mlp_forward.1} parent=1 // pred_check_branch
      %15 = sbr.rel (0) target = $region5
    $region4: #{mlp_forward.1} parent=1 // pred_region
      _
    $region5: #{mlp_forward.1} parent=1 // pred_fallthru
      _
    // Predicated region
    $region6: #{mlp_forward.1} parent=1 // pred_check
      _
    $region7: #{mlp_forward.1} parent=1 // pred_check_branch
      %17 = sbr.rel (0) target = $region9
    $region8: #{mlp_forward.1} parent=1 // pred_region
      %19 = vsyncadd [#allocation3], 0
      %s20 = sshll.u32 %s1, 4
      %s21 = int_to_ptr.hbm [resolvable:$true] %s20
      %s22 = sshll.u32 [#allocation2], 4
      %s23 = int_to_ptr.vmem [resolvable:$true] %s22
      %28 = dma.hbm_to_vmem [thread:$0]  %s21, 8192, %s23, [#allocation3], 256, 256, 16
    $region9: #{mlp_forward.1} parent=1 // pred_fallthru
      _
    // Predicated region
    $region10: #{mlp_forward.1} parent=1 // pred_check
      _
    $region11: #{mlp_forward.1} parent=1 // pred_check_branch
      %30 = sbr.rel (0) target = $region13
    $region12: #{mlp_forward.1} parent=1 // pred_region
      _
    $region13: #{mlp_forward.1} parent=1 // pred_fallthru
      _
    // Predicated region
    $region14: #{mlp_forward.1} parent=1 // pred_check
      _
    $region15: #{mlp_forward.1} parent=1 // pred_check_branch
      %32 = sbr.rel (0) target = $region17
    $region16: #{mlp_forward.1} parent=1 // pred_region
      %34 = vsyncadd [#allocation5], 0
      %s35 = sshll.u32 %s3, 4
      %s36 = int_to_ptr.hbm [resolvable:$true] %s35
      %s37 = sshll.u32 [#allocation4], 4
      %s38 = int_to_ptr.vmem [resolvable:$true] %s37
      %43 = dma.hbm_to_vmem [thread:$0]  %s36, 16384, %s38, [#allocation5], 256, 256, 16
    $region17: #{mlp_forward.1} parent=1 // pred_fallthru
      _
    // Predicated region
    $region18: #{mlp_forward.1} parent=1 // pred_check
      _
    $region19: #{mlp_forward.1} parent=1 // pred_check_branch
      %45 = sbr.rel (0) target = $region21
    $region20: #{mlp_forward.1} parent=1 // pred_region
      _
    $region21: #{mlp_forward.1} parent=1 // pred_fallthru
      _
    // Predicated region
    $region22: #{mlp_forward.1} parent=1 // pred_check
      _
    $region23: #{mlp_forward.1} parent=1 // pred_check_branch
      %47 = sbr.rel (0) target = $region25
    $region24: #{mlp_forward.1} parent=1 // pred_region
      %49 = vsyncadd [#allocation5], 0
      %s50 = sshll.u32 %s5, 4
      %s51 = int_to_ptr.hbm [resolvable:$true] %s50
      %s52 = sshll.u32 [#allocation6], 4
      %s53 = int_to_ptr.vmem [resolvable:$true] %s52
      %58 = dma.hbm_to_vmem [thread:$0]  %s51, 4096, %s53, [#allocation5], 64, 64, 4
    $region25: #{mlp_forward.1} parent=1 // pred_fallthru
      _
    // Predicated region
    $region26: #{mlp_forward.1} parent=1 // pred_check
      _
    $region27: #{mlp_forward.1} parent=1 // pred_check_branch
      %60 = sbr.rel (0) target = $region29
    $region28: #{mlp_forward.1} parent=1 // pred_region
      _
    $region29: #{mlp_forward.1} parent=1 // pred_fallthru
      _
    // Predicated region
    $region30: #{mlp_forward.1} parent=1 // pred_check
      _
    $region31: #{mlp_forward.1} parent=1 // pred_check_branch
      %62 = sbr.rel (0) target = $region33
    $region32: #{mlp_forward.1} parent=1 // pred_region
      %64 = dma.done [#allocation3], 8192
    $region33: #{mlp_forward.1} parent=1 // pred_fallthru
      _
    // Predicated region
    $region34: #{mlp_forward.1} parent=1 // pred_check
      _
    $region35: #{mlp_forward.1} parent=1 // pred_check_branch
      %66 = sbr.rel (0) target = $region37
    $region36: #{mlp_forward.1} parent=1 // pred_region
      %68 = dma.done [#allocation5], 16384
    $region37: #{mlp_forward.1} parent=1 // pred_fallthru
      _
    // Predicated region
    $region38: #{mlp_forward.1} parent=1 // pred_check
      _
    $region39: #{mlp_forward.1} parent=1 // pred_check_branch
      %70 = sbr.rel (0) target = $region41
    $region40: #{mlp_forward.1} parent=1 // pred_region
      %72 = dma.done [#allocation5], 4096
    $region41: #{mlp_forward.1} parent=1 // pred_fallthru
      _
    %v73 = vld [vmem:[%s0] sm:$0xff]
    %v74 = vld [vmem:[%s0 + $0x8] sm:$0xff]
    %v75 = vld [vmem:[#allocation2] sm:$0xff]
    %v76 = vld [vmem:[#allocation2 + $0x8] sm:$0xff]
    %v77 = vld [vmem:[#allocation2 + $0x10] sm:$0xff]
    %v78 = vld [vmem:[#allocation2 + $0x18] sm:$0xff]
    %v79 = vld [vmem:[#allocation2 + $0x20] sm:$0xff]
    %v80 = vld [vmem:[#allocation2 + $0x28] sm:$0xff]
    %v81 = vld [vmem:[#allocation2 + $0x30] sm:$0xff]
    %v82 = vld [vmem:[#allocation2 + $0x38] sm:$0xff]
    %v83 = vld [vmem:[#allocation2 + $0x40] sm:$0xff]
    %v84 = vld [vmem:[#allocation2 + $0x48] sm:$0xff]
    %v85 = vld [vmem:[#allocation2 + $0x50] sm:$0xff]
    %v86 = vld [vmem:[#allocation2 + $0x58] sm:$0xff]
    %v87 = vld [vmem:[#allocation2 + $0x60] sm:$0xff]
    %v88 = vld [vmem:[#allocation2 + $0x68] sm:$0xff]
    %v89 = vld [vmem:[#allocation2 + $0x70] sm:$0xff]
    %v90 = vld [vmem:[#allocation2 + $0x78] sm:$0xff]
    %v91 = vld [vmem:[#allocation2 + $0x80] sm:$0xff]
    %v92 = vld [vmem:[#allocation2 + $0x88] sm:$0xff]
    %v93 = vld [vmem:[#allocation2 + $0x90] sm:$0xff]
    %v94 = vld [vmem:[#allocation2 + $0x98] sm:$0xff]
    %v95 = vld [vmem:[#allocation2 + $0xa0] sm:$0xff]
    %v96 = vld [vmem:[#allocation2 + $0xa8] sm:$0xff]
    %v97 = vld [vmem:[#allocation2 + $0xb0] sm:$0xff]
    %v98 = vld [vmem:[#allocation2 + $0xb8] sm:$0xff]
    %v99 = vld [vmem:[#allocation2 + $0xc0] sm:$0xff]
    %v100 = vld [vmem:[#allocation2 + $0xc8] sm:$0xff]
    %v101 = vld [vmem:[#allocation2 + $0xd0] sm:$0xff]
    %v102 = vld [vmem:[#allocation2 + $0xd8] sm:$0xff]
    %v103 = vld [vmem:[#allocation2 + $0xe0] sm:$0xff]
    %v104 = vld [vmem:[#allocation2 + $0xe8] sm:$0xff]
    %v105 = vld [vmem:[#allocation2 + $0xf0] sm:$0xff]
    %v106 = vld [vmem:[#allocation2 + $0xf8] sm:$0xff]
    %v107 = vld [vmem:[#allocation2 + $0x100] sm:$0xff]
    %v108 = vld [vmem:[#allocation2 + $0x108] sm:$0xff]
    %v109 = vld [vmem:[#allocation2 + $0x110] sm:$0xff]
    %v110 = vld [vmem:[#allocation2 + $0x118] sm:$0xff]
    %v111 = vld [vmem:[#allocation2 + $0x120] sm:$0xff]
    %v112 = vld [vmem:[#allocation2 + $0x128] sm:$0xff]
    %v113 = vld [vmem:[#allocation2 + $0x130] sm:$0xff]
    %v114 = vld [vmem:[#allocation2 + $0x138] sm:$0xff]
    %v115 = vld [vmem:[#allocation2 + $0x140] sm:$0xff]
    %v116 = vld [vmem:[#allocation2 + $0x148] sm:$0xff]
    %v117 = vld [vmem:[#allocation2 + $0x150] sm:$0xff]
    %v118 = vld [vmem:[#allocation2 + $0x158] sm:$0xff]
    %v119 = vld [vmem:[#allocation2 + $0x160] sm:$0xff]
    %v120 = vld [vmem:[#allocation2 + $0x168] sm:$0xff]
    %v121 = vld [vmem:[#allocation2 + $0x170] sm:$0xff]
    %v122 = vld [vmem:[#allocation2 + $0x178] sm:$0xff]
    %v123 = vld [vmem:[#allocation2 + $0x180] sm:$0xff]
    %v124 = vld [vmem:[#allocation2 + $0x188] sm:$0xff]
    %v125 = vld [vmem:[#allocation2 + $0x190] sm:$0xff]
    %v126 = vld [vmem:[#allocation2 + $0x198] sm:$0xff]
    %v127 = vld [vmem:[#allocation2 + $0x1a0] sm:$0xff]
    %v128 = vld [vmem:[#allocation2 + $0x1a8] sm:$0xff]
    %v129 = vld [vmem:[#allocation2 + $0x1b0] sm:$0xff]
    %v130 = vld [vmem:[#allocation2 + $0x1b8] sm:$0xff]
    %v131 = vld [vmem:[#allocation2 + $0x1c0] sm:$0xff]
    %v132 = vld [vmem:[#allocation2 + $0x1c8] sm:$0xff]
    %v133 = vld [vmem:[#allocation2 + $0x1d0] sm:$0xff]
    %v134 = vld [vmem:[#allocation2 + $0x1d8] sm:$0xff]
    %v135 = vld [vmem:[#allocation2 + $0x1e0] sm:$0xff]
    %v136 = vld [vmem:[#allocation2 + $0x1e8] sm:$0xff]
    %v137 = vld [vmem:[#allocation2 + $0x1f0] sm:$0xff]
    %v138 = vld [vmem:[#allocation2 + $0x1f8] sm:$0xff]
    %v139 = vld [vmem:[%s2] sm:$0xf]
    %v141 = vperm.slane %v139, 0
    %v142 = vperm.slane %v139, 1
    %v143 = vperm.slane %v139, 2
    %v144 = vperm.slane %v139, 3
    %v151 = vunpack.c.l.b16 %v73
    %v152 = vunpack.c.h.b16 %v73
    %v153 = vunpack.c.l.b16 %v74
    %v154 = vunpack.c.h.b16 %v74
    %v155 = vpack.c.b16 %v153, %v151
    %v156 = vpack.c.b16 %v154, %v152
    %v223 = vunpack.c.l.b16 %v75
    %v224 = vunpack.c.h.b16 %v75
    %v225 = vunpack.c.l.b16 %v76
    %v226 = vunpack.c.h.b16 %v76
    %v227 = vunpack.c.l.b16 %v77
    %v228 = vunpack.c.h.b16 %v77
    %v229 = vunpack.c.l.b16 %v78
    %v230 = vunpack.c.h.b16 %v78
    %v231 = vunpack.c.l.b16 %v79
    %v232 = vunpack.c.h.b16 %v79
    %v233 = vunpack.c.l.b16 %v80
    %v234 = vunpack.c.h.b16 %v80
    %v235 = vunpack.c.l.b16 %v81
    %v236 = vunpack.c.h.b16 %v81
    %v237 = vunpack.c.l.b16 %v82
    %v238 = vunpack.c.h.b16 %v82
    %v239 = vunpack.c.l.b16 %v83
    %v240 = vunpack.c.h.b16 %v83
    %v241 = vunpack.c.l.b16 %v84
    %v242 = vunpack.c.h.b16 %v84
    %v243 = vunpack.c.l.b16 %v85
    %v244 = vunpack.c.h.b16 %v85
    %v245 = vunpack.c.l.b16 %v86
    %v246 = vunpack.c.h.b16 %v86
    %v247 = vunpack.c.l.b16 %v87
    %v248 = vunpack.c.h.b16 %v87
    %v249 = vunpack.c.l.b16 %v88
    %v250 = vunpack.c.h.b16 %v88
    %v251 = vunpack.c.l.b16 %v89
    %v252 = vunpack.c.h.b16 %v89
    %v253 = vunpack.c.l.b16 %v90
    %v254 = vunpack.c.h.b16 %v90
    %v255 = vunpack.c.l.b16 %v91
    %v256 = vunpack.c.h.b16 %v91
    %v257 = vunpack.c.l.b16 %v92
    %v258 = vunpack.c.h.b16 %v92
    %v259 = vunpack.c.l.b16 %v93
    %v260 = vunpack.c.h.b16 %v93
    %v261 = vunpack.c.l.b16 %v94
    %v262 = vunpack.c.h.b16 %v94
    %v263 = vunpack.c.l.b16 %v95
    %v264 = vunpack.c.h.b16 %v95
    %v265 = vunpack.c.l.b16 %v96
    %v266 = vunpack.c.h.b16 %v96
    %v267 = vunpack.c.l.b16 %v97
    %v268 = vunpack.c.h.b16 %v97
    %v269 = vunpack.c.l.b16 %v98
    %v270 = vunpack.c.h.b16 %v98
    %v271 = vunpack.c.l.b16 %v99
    %v272 = vunpack.c.h.b16 %v99
    %v273 = vunpack.c.l.b16 %v100
    %v274 = vunpack.c.h.b16 %v100
    %v275 = vunpack.c.l.b16 %v101
    %v276 = vunpack.c.h.b16 %v101
    %v277 = vunpack.c.l.b16 %v102
    %v278 = vunpack.c.h.b16 %v102
    %v279 = vunpack.c.l.b16 %v103
    %v280 = vunpack.c.h.b16 %v103
    %v281 = vunpack.c.l.b16 %v104
    %v282 = vunpack.c.h.b16 %v104
    %v283 = vunpack.c.l.b16 %v105
    %v284 = vunpack.c.h.b16 %v105
    %v285 = vunpack.c.l.b16 %v106
    %v286 = vunpack.c.h.b16 %v106
    %v287 = vunpack.c.l.b16 %v107
    %v288 = vunpack.c.h.b16 %v107
    %v289 = vunpack.c.l.b16 %v108
    %v290 = vunpack.c.h.b16 %v108
    %v291 = vunpack.c.l.b16 %v109
    %v292 = vunpack.c.h.b16 %v109
    %v293 = vunpack.c.l.b16 %v110
    %v294 = vunpack.c.h.b16 %v110
    %v295 = vunpack.c.l.b16 %v111
    %v296 = vunpack.c.h.b16 %v111
    %v297 = vunpack.c.l.b16 %v112
    %v298 = vunpack.c.h.b16 %v112
    %v299 = vunpack.c.l.b16 %v113
    %v300 = vunpack.c.h.b16 %v113
    %v301 = vunpack.c.l.b16 %v114
    %v302 = vunpack.c.h.b16 %v114
    %v303 = vunpack.c.l.b16 %v115
    %v304 = vunpack.c.h.b16 %v115
    %v305 = vunpack.c.l.b16 %v116
    %v306 = vunpack.c.h.b16 %v116
    %v307 = vunpack.c.l.b16 %v117
    %v308 = vunpack.c.h.b16 %v117
    %v309 = vunpack.c.l.b16 %v118
    %v310 = vunpack.c.h.b16 %v118
    %v311 = vunpack.c.l.b16 %v119
    %v312 = vunpack.c.h.b16 %v119
    %v313 = vunpack.c.l.b16 %v120
    %v314 = vunpack.c.h.b16 %v120
    %v315 = vunpack.c.l.b16 %v121
    %v316 = vunpack.c.h.b16 %v121
    %v317 = vunpack.c.l.b16 %v122
    %v318 = vunpack.c.h.b16 %v122
    %v319 = vunpack.c.l.b16 %v123
    %v320 = vunpack.c.h.b16 %v123
    %v321 = vunpack.c.l.b16 %v124
    %v322 = vunpack.c.h.b16 %v124
    %v323 = vunpack.c.l.b16 %v125
    %v324 = vunpack.c.h.b16 %v125
    %v325 = vunpack.c.l.b16 %v126
    %v326 = vunpack.c.h.b16 %v126
    %v327 = vunpack.c.l.b16 %v127
    %v328 = vunpack.c.h.b16 %v127
    %v329 = vunpack.c.l.b16 %v128
    %v330 = vunpack.c.h.b16 %v128
    %v331 = vunpack.c.l.b16 %v129
    %v332 = vunpack.c.h.b16 %v129
    %v333 = vunpack.c.l.b16 %v130
    %v334 = vunpack.c.h.b16 %v130
    %v335 = vunpack.c.l.b16 %v131
    %v336 = vunpack.c.h.b16 %v131
    %v337 = vunpack.c.l.b16 %v132
    %v338 = vunpack.c.h.b16 %v132
    %v339 = vunpack.c.l.b16 %v133
    %v340 = vunpack.c.h.b16 %v133
    %v341 = vunpack.c.l.b16 %v134
    %v342 = vunpack.c.h.b16 %v134
    %v343 = vunpack.c.l.b16 %v135
    %v344 = vunpack.c.h.b16 %v135
    %v345 = vunpack.c.l.b16 %v136
    %v346 = vunpack.c.h.b16 %v136
    %v347 = vunpack.c.l.b16 %v137
    %v348 = vunpack.c.h.b16 %v137
    %v349 = vunpack.c.l.b16 %v138
    %v350 = vunpack.c.h.b16 %v138
    %v351 = vpack.c.b16 %v227, %v223
    %v352 = vpack.c.b16 %v228, %v224
    %v353 = vpack.c.b16 %v229, %v225
    %v354 = vpack.c.b16 %v230, %v226
    %v355 = vpack.c.b16 %v235, %v231
    %v356 = vpack.c.b16 %v236, %v232
    %v357 = vpack.c.b16 %v237, %v233
    %v358 = vpack.c.b16 %v238, %v234
    %v359 = vpack.c.b16 %v243, %v239
    %v360 = vpack.c.b16 %v244, %v240
    %v361 = vpack.c.b16 %v245, %v241
    %v362 = vpack.c.b16 %v246, %v242
    %v363 = vpack.c.b16 %v251, %v247
    %v364 = vpack.c.b16 %v252, %v248
    %v365 = vpack.c.b16 %v253, %v249
    %v366 = vpack.c.b16 %v254, %v250
    %v367 = vpack.c.b16 %v259, %v255
    %v368 = vpack.c.b16 %v260, %v256
    %v369 = vpack.c.b16 %v261, %v257
    %v370 = vpack.c.b16 %v262, %v258
    %v371 = vpack.c.b16 %v267, %v263
    %v372 = vpack.c.b16 %v268, %v264
    %v373 = vpack.c.b16 %v269, %v265
    %v374 = vpack.c.b16 %v270, %v266
    %v375 = vpack.c.b16 %v275, %v271
    %v376 = vpack.c.b16 %v276, %v272
    %v377 = vpack.c.b16 %v277, %v273
    %v378 = vpack.c.b16 %v278, %v274
    %v379 = vpack.c.b16 %v283, %v279
    %v380 = vpack.c.b16 %v284, %v280
    %v381 = vpack.c.b16 %v285, %v281
    %v382 = vpack.c.b16 %v286, %v282
    %v383 = vpack.c.b16 %v291, %v287
    %v384 = vpack.c.b16 %v292, %v288
    %v385 = vpack.c.b16 %v293, %v289
    %v386 = vpack.c.b16 %v294, %v290
    %v387 = vpack.c.b16 %v299, %v295
    %v388 = vpack.c.b16 %v300, %v296
    %v389 = vpack.c.b16 %v301, %v297
    %v390 = vpack.c.b16 %v302, %v298
    %v391 = vpack.c.b16 %v307, %v303
    %v392 = vpack.c.b16 %v308, %v304
    %v393 = vpack.c.b16 %v309, %v305
    %v394 = vpack.c.b16 %v310, %v306
    %v395 = vpack.c.b16 %v315, %v311
    %v396 = vpack.c.b16 %v316, %v312
    %v397 = vpack.c.b16 %v317, %v313
    %v398 = vpack.c.b16 %v318, %v314
    %v399 = vpack.c.b16 %v323, %v319
    %v400 = vpack.c.b16 %v324, %v320
    %v401 = vpack.c.b16 %v325, %v321
    %v402 = vpack.c.b16 %v326, %v322
    %v403 = vpack.c.b16 %v331, %v327
    %v404 = vpack.c.b16 %v332, %v328
    %v405 = vpack.c.b16 %v333, %v329
    %v406 = vpack.c.b16 %v334, %v330
    %v407 = vpack.c.b16 %v339, %v335
    %v408 = vpack.c.b16 %v340, %v336
    %v409 = vpack.c.b16 %v341, %v337
    %v410 = vpack.c.b16 %v342, %v338
    %v411 = vpack.c.b16 %v347, %v343
    %v412 = vpack.c.b16 %v348, %v344
    %v413 = vpack.c.b16 %v349, %v345
    %v414 = vpack.c.b16 %v350, %v346
    %479 = vmatpush.bf16.msra.mxu0 %v379
    %480 = vmatpush.bf16.msra.mxu0 %v375
    %481 = vmatpush.bf16.msra.mxu0 %v371
    %482 = vmatpush.bf16.msra.mxu0 %v367
    %483 = vmatpush.bf16.msra.mxu0 %v363
    %484 = vmatpush.bf16.msra.mxu0 %v359
    %485 = vmatpush.bf16.msra.mxu0 %v355
    %486 = vmatpush.bf16.msra.mxu0 %v351
    %487 = vmatmul.bf16.gmra.mxu0 %v155
    %v488 = vpop.f32.mrf.mxu0
    %v489 = vadd.f32 %v141, %v488
    %v490 = vpop.f32.mrf.mxu0
    %v491 = vadd.f32 %v141, %v490
    %492 = vdwg.mxu0
    %493 = vmatpush.bf16.msra.mxu0 %v411
    %494 = vmatpush.bf16.msra.mxu0 %v407
    %495 = vmatpush.bf16.msra.mxu0 %v403
    %496 = vmatpush.bf16.msra.mxu0 %v399
    %497 = vmatpush.bf16.msra.mxu0 %v395
    %498 = vmatpush.bf16.msra.mxu0 %v391
    %499 = vmatpush.bf16.msra.mxu0 %v387
    %500 = vmatpush.bf16.msra.mxu0 %v383
    %501 = vmatmul.bf16.gmra.mxu0 %v156
    %v502 = vpop.f32.mrf.mxu0
    %v503 = vadd.f32 %v489, %v502
    %v504 = vpop.f32.mrf.mxu0
    %v505 = vadd.f32 %v491, %v504
    %506 = vdwg.mxu0
    %507 = vmatpush.bf16.msra.mxu0 %v380
    %508 = vmatpush.bf16.msra.mxu0 %v376
    %509 = vmatpush.bf16.msra.mxu0 %v372
    %510 = vmatpush.bf16.msra.mxu0 %v368
    %511 = vmatpush.bf16.msra.mxu0 %v364
    %512 = vmatpush.bf16.msra.mxu0 %v360
    %513 = vmatpush.bf16.msra.mxu0 %v356
    %514 = vmatpush.bf16.msra.mxu0 %v352
    %515 = vmatmul.bf16.gmra.mxu0 %v155
    %v516 = vpop.f32.mrf.mxu0
    %v517 = vadd.f32 %v142, %v516
    %v518 = vpop.f32.mrf.mxu0
    %v519 = vadd.f32 %v142, %v518
    %520 = vdwg.mxu0
    %521 = vmatpush.bf16.msra.mxu0 %v412
    %522 = vmatpush.bf16.msra.mxu0 %v408
    %523 = vmatpush.bf16.msra.mxu0 %v404
    %524 = vmatpush.bf16.msra.mxu0 %v400
    %525 = vmatpush.bf16.msra.mxu0 %v396
    %526 = vmatpush.bf16.msra.mxu0 %v392
    %527 = vmatpush.bf16.msra.mxu0 %v388
    %528 = vmatpush.bf16.msra.mxu0 %v384
    %529 = vmatmul.bf16.gmra.mxu0 %v156
    %v530 = vpop.f32.mrf.mxu0
    %v531 = vadd.f32 %v517, %v530
    %v532 = vpop.f32.mrf.mxu0
    %v533 = vadd.f32 %v519, %v532
    %534 = vdwg.mxu0
    %535 = vmatpush.bf16.msra.mxu0 %v381
    %536 = vmatpush.bf16.msra.mxu0 %v377
    %537 = vmatpush.bf16.msra.mxu0 %v373
    %538 = vmatpush.bf16.msra.mxu0 %v369
    %539 = vmatpush.bf16.msra.mxu0 %v365
    %540 = vmatpush.bf16.msra.mxu0 %v361
    %541 = vmatpush.bf16.msra.mxu0 %v357
    %542 = vmatpush.bf16.msra.mxu0 %v353
    %543 = vmatmul.bf16.gmra.mxu0 %v155
    %v544 = vpop.f32.mrf.mxu0
    %v545 = vadd.f32 %v143, %v544
    %v546 = vpop.f32.mrf.mxu0
    %v547 = vadd.f32 %v143, %v546
    %548 = vdwg.mxu0
    %549 = vmatpush.bf16.msra.mxu0 %v413
    %550 = vmatpush.bf16.msra.mxu0 %v409
    %551 = vmatpush.bf16.msra.mxu0 %v405
    %552 = vmatpush.bf16.msra.mxu0 %v401
    %553 = vmatpush.bf16.msra.mxu0 %v397
    %554 = vmatpush.bf16.msra.mxu0 %v393
    %555 = vmatpush.bf16.msra.mxu0 %v389
    %556 = vmatpush.bf16.msra.mxu0 %v385
    %557 = vmatmul.bf16.gmra.mxu0 %v156
    %v558 = vpop.f32.mrf.mxu0
    %v559 = vadd.f32 %v545, %v558
    %v560 = vpop.f32.mrf.mxu0
    %v561 = vadd.f32 %v547, %v560
    %562 = vdwg.mxu0
    %563 = vmatpush.bf16.msra.mxu0 %v382
    %564 = vmatpush.bf16.msra.mxu0 %v378
    %565 = vmatpush.bf16.msra.mxu0 %v374
    %566 = vmatpush.bf16.msra.mxu0 %v370
    %567 = vmatpush.bf16.msra.mxu0 %v366
    %568 = vmatpush.bf16.msra.mxu0 %v362
    %569 = vmatpush.bf16.msra.mxu0 %v358
    %570 = vmatpush.bf16.msra.mxu0 %v354
    %571 = vmatmul.bf16.gmra.mxu0 %v155
    %v572 = vpop.f32.mrf.mxu0
    %v573 = vadd.f32 %v144, %v572
    %v574 = vpop.f32.mrf.mxu0
    %v575 = vadd.f32 %v144, %v574
    %576 = vdwg.mxu0
    %577 = vmatpush.bf16.msra.mxu0 %v414
    %578 = vmatpush.bf16.msra.mxu0 %v410
    %579 = vmatpush.bf16.msra.mxu0 %v406
    %580 = vmatpush.bf16.msra.mxu0 %v402
    %581 = vmatpush.bf16.msra.mxu0 %v398
    %582 = vmatpush.bf16.msra.mxu0 %v394
    %583 = vmatpush.bf16.msra.mxu0 %v390
    %584 = vmatpush.bf16.msra.mxu0 %v386
    %585 = vmatmul.bf16.gmra.mxu0 %v156
    %v586 = vpop.f32.mrf.mxu0
    %v587 = vadd.f32 %v573, %v586
    %v588 = vpop.f32.mrf.mxu0
    %v589 = vadd.f32 %v575, %v588
    %590 = vdwg.mxu0
    %v591 = vmax.f32 %v503, 0.0
    %v592 = vmax.f32 %v531, 0.0
    %v593 = vmax.f32 %v559, 0.0
    %v594 = vmax.f32 %v587, 0.0
    %v595 = vmax.f32 %v505, 0.0
    %v596 = vmax.f32 %v533, 0.0
    %v597 = vmax.f32 %v561, 0.0
    %v598 = vmax.f32 %v589, 0.0
    %v599 = vpack.c.bf16 %v595, %v591
    %v600 = vpack.c.bf16 %v596, %v592
    %v601 = vpack.c.bf16 %v597, %v593
    %v602 = vpack.c.bf16 %v598, %v594
    %v603 = vld [vmem:[#allocation4] sm:$0xff]
    %v604 = vld [vmem:[#allocation4 + $0x8] sm:$0xff]
    %v605 = vld [vmem:[#allocation4 + $0x10] sm:$0xff]
    %v606 = vld [vmem:[#allocation4 + $0x18] sm:$0xff]
    %v607 = vld [vmem:[#allocation4 + $0x20] sm:$0xff]
    %v608 = vld [vmem:[#allocation4 + $0x28] sm:$0xff]
    %v609 = vld [vmem:[#allocation4 + $0x30] sm:$0xff]
    %v610 = vld [vmem:[#allocation4 + $0x38] sm:$0xff]
    %v611 = vld [vmem:[#allocation4 + $0x40] sm:$0xff]
    %v612 = vld [vmem:[#allocation4 + $0x48] sm:$0xff]
    %v613 = vld [vmem:[#allocation4 + $0x50] sm:$0xff]
    %v614 = vld [vmem:[#allocation4 + $0x58] sm:$0xff]
    %v615 = vld [vmem:[#allocation4 + $0x60] sm:$0xff]
    %v616 = vld [vmem:[#allocation4 + $0x68] sm:$0xff]
    %v617 = vld [vmem:[#allocation4 + $0x70] sm:$0xff]
    %v618 = vld [vmem:[#allocation4 + $0x78] sm:$0xff]
    %v619 = vld [vmem:[#allocation4 + $0x80] sm:$0xff]
    %v620 = vld [vmem:[#allocation4 + $0x88] sm:$0xff]
    %v621 = vld [vmem:[#allocation4 + $0x90] sm:$0xff]
    %v622 = vld [vmem:[#allocation4 + $0x98] sm:$0xff]
    %v623 = vld [vmem:[#allocation4 + $0xa0] sm:$0xff]
    %v624 = vld [vmem:[#allocation4 + $0xa8] sm:$0xff]
    %v625 = vld [vmem:[#allocation4 + $0xb0] sm:$0xff]
    %v626 = vld [vmem:[#allocation4 + $0xb8] sm:$0xff]
    %v627 = vld [vmem:[#allocation4 + $0xc0] sm:$0xff]
    %v628 = vld [vmem:[#allocation4 + $0xc8] sm:$0xff]
    %v629 = vld [vmem:[#allocation4 + $0xd0] sm:$0xff]
    %v630 = vld [vmem:[#allocation4 + $0xd8] sm:$0xff]
    %v631 = vld [vmem:[#allocation4 + $0xe0] sm:$0xff]
    %v632 = vld [vmem:[#allocation4 + $0xe8] sm:$0xff]
    %v633 = vld [vmem:[#allocation4 + $0xf0] sm:$0xff]
    %v634 = vld [vmem:[#allocation4 + $0xf8] sm:$0xff]
    %v635 = vld [vmem:[#allocation4 + $0x100] sm:$0xff]
    %v636 = vld [vmem:[#allocation4 + $0x108] sm:$0xff]
    %v637 = vld [vmem:[#allocation4 + $0x110] sm:$0xff]
    %v638 = vld [vmem:[#allocation4 + $0x118] sm:$0xff]
    %v639 = vld [vmem:[#allocation4 + $0x120] sm:$0xff]
    %v640 = vld [vmem:[#allocation4 + $0x128] sm:$0xff]
    %v641 = vld [vmem:[#allocation4 + $0x130] sm:$0xff]
    %v642 = vld [vmem:[#allocation4 + $0x138] sm:$0xff]
    %v643 = vld [vmem:[#allocation4 + $0x140] sm:$0xff]
    %v644 = vld [vmem:[#allocation4 + $0x148] sm:$0xff]
    %v645 = vld [vmem:[#allocation4 + $0x150] sm:$0xff]
    %v646 = vld [vmem:[#allocation4 + $0x158] sm:$0xff]
    %v647 = vld [vmem:[#allocation4 + $0x160] sm:$0xff]
    %v648 = vld [vmem:[#allocation4 + $0x168] sm:$0xff]
    %v649 = vld [vmem:[#allocation4 + $0x170] sm:$0xff]
    %v650 = vld [vmem:[#allocation4 + $0x178] sm:$0xff]
    %v651 = vld [vmem:[#allocation4 + $0x180] sm:$0xff]
    %v652 = vld [vmem:[#allocation4 + $0x188] sm:$0xff]
    %v653 = vld [vmem:[#allocation4 + $0x190] sm:$0xff]
    %v654 = vld [vmem:[#allocation4 + $0x198] sm:$0xff]
    %v655 = vld [vmem:[#allocation4 + $0x1a0] sm:$0xff]
    %v656 = vld [vmem:[#allocation4 + $0x1a8] sm:$0xff]
    %v657 = vld [vmem:[#allocation4 + $0x1b0] sm:$0xff]
    %v658 = vld [vmem:[#allocation4 + $0x1b8] sm:$0xff]
    %v659 = vld [vmem:[#allocation4 + $0x1c0] sm:$0xff]
    %v660 = vld [vmem:[#allocation4 + $0x1c8] sm:$0xff]
    %v661 = vld [vmem:[#allocation4 + $0x1d0] sm:$0xff]
    %v662 = vld [vmem:[#allocation4 + $0x1d8] sm:$0xff]
    %v663 = vld [vmem:[#allocation4 + $0x1e0] sm:$0xff]
    %v664 = vld [vmem:[#allocation4 + $0x1e8] sm:$0xff]
    %v665 = vld [vmem:[#allocation4 + $0x1f0] sm:$0xff]
    %v666 = vld [vmem:[#allocation4 + $0x1f8] sm:$0xff]
    %v667 = vld [vmem:[#allocation4 + $0x200] sm:$0xff]
    %v668 = vld [vmem:[#allocation4 + $0x208] sm:$0xff]
    %v669 = vld [vmem:[#allocation4 + $0x210] sm:$0xff]
    %v670 = vld [vmem:[#allocation4 + $0x218] sm:$0xff]
    %v671 = vld [vmem:[#allocation4 + $0x220] sm:$0xff]
    %v672 = vld [vmem:[#allocation4 + $0x228] sm:$0xff]
    %v673 = vld [vmem:[#allocation4 + $0x230] sm:$0xff]
    %v674 = vld [vmem:[#allocation4 + $0x238] sm:$0xff]
    %v675 = vld [vmem:[#allocation4 + $0x240] sm:$0xff]
    %v676 = vld [vmem:[#allocation4 + $0x248] sm:$0xff]
    %v677 = vld [vmem:[#allocation4 + $0x250] sm:$0xff]
    %v678 = vld [vmem:[#allocation4 + $0x258] sm:$0xff]
    %v679 = vld [vmem:[#allocation4 + $0x260] sm:$0xff]
    %v680 = vld [vmem:[#allocation4 + $0x268] sm:$0xff]
    %v681 = vld [vmem:[#allocation4 + $0x270] sm:$0xff]
    %v682 = vld [vmem:[#allocation4 + $0x278] sm:$0xff]
    %v683 = vld [vmem:[#allocation4 + $0x280] sm:$0xff]
    %v684 = vld [vmem:[#allocation4 + $0x288] sm:$0xff]
    %v685 = vld [vmem:[#allocation4 + $0x290] sm:$0xff]
    %v686 = vld [vmem:[#allocation4 + $0x298] sm:$0xff]
    %v687 = vld [vmem:[#allocation4 + $0x2a0] sm:$0xff]
    %v688 = vld [vmem:[#allocation4 + $0x2a8] sm:$0xff]
    %v689 = vld [vmem:[#allocation4 + $0x2b0] sm:$0xff]
    %v690 = vld [vmem:[#allocation4 + $0x2b8] sm:$0xff]
    %v691 = vld [vmem:[#allocation4 + $0x2c0] sm:$0xff]
    %v692 = vld [vmem:[#allocation4 + $0x2c8] sm:$0xff]
    %v693 = vld [vmem:[#allocation4 + $0x2d0] sm:$0xff]
    %v694 = vld [vmem:[#allocation4 + $0x2d8] sm:$0xff]
    %v695 = vld [vmem:[#allocation4 + $0x2e0] sm:$0xff]
    %v696 = vld [vmem:[#allocation4 + $0x2e8] sm:$0xff]
    %v697 = vld [vmem:[#allocation4 + $0x2f0] sm:$0xff]
    %v698 = vld [vmem:[#allocation4 + $0x2f8] sm:$0xff]
    %v699 = vld [vmem:[#allocation4 + $0x300] sm:$0xff]
    %v700 = vld [vmem:[#allocation4 + $0x308] sm:$0xff]
    %v701 = vld [vmem:[#allocation4 + $0x310] sm:$0xff]
    %v702 = vld [vmem:[#allocation4 + $0x318] sm:$0xff]
    %v703 = vld [vmem:[#allocation4 + $0x320] sm:$0xff]
    %v704 = vld [vmem:[#allocation4 + $0x328] sm:$0xff]
    %v705 = vld [vmem:[#allocation4 + $0x330] sm:$0xff]
    %v706 = vld [vmem:[#allocation4 + $0x338] sm:$0xff]
    %v707 = vld [vmem:[#allocation4 + $0x340] sm:$0xff]
    %v708 = vld [vmem:[#allocation4 + $0x348] sm:$0xff]
    %v709 = vld [vmem:[#allocation4 + $0x350] sm:$0xff]
    %v710 = vld [vmem:[#allocation4 + $0x358] sm:$0xff]
    %v711 = vld [vmem:[#allocation4 + $0x360] sm:$0xff]
    %v712 = vld [vmem:[#allocation4 + $0x368] sm:$0xff]
    %v713 = vld [vmem:[#allocation4 + $0x370] sm:$0xff]
    %v714 = vld [vmem:[#allocation4 + $0x378] sm:$0xff]
    %v715 = vld [vmem:[#allocation4 + $0x380] sm:$0xff]
    %v716 = vld [vmem:[#allocation4 + $0x388] sm:$0xff]
    %v717 = vld [vmem:[#allocation4 + $0x390] sm:$0xff]
    %v718 = vld [vmem:[#allocation4 + $0x398] sm:$0xff]
    %v719 = vld [vmem:[#allocation4 + $0x3a0] sm:$0xff]
    %v720 = vld [vmem:[#allocation4 + $0x3a8] sm:$0xff]
    %v721 = vld [vmem:[#allocation4 + $0x3b0] sm:$0xff]
    %v722 = vld [vmem:[#allocation4 + $0x3b8] sm:$0xff]
    %v723 = vld [vmem:[#allocation4 + $0x3c0] sm:$0xff]
    %v724 = vld [vmem:[#allocation4 + $0x3c8] sm:$0xff]
    %v725 = vld [vmem:[#allocation4 + $0x3d0] sm:$0xff]
    %v726 = vld [vmem:[#allocation4 + $0x3d8] sm:$0xff]
    %v727 = vld [vmem:[#allocation4 + $0x3e0] sm:$0xff]
    %v728 = vld [vmem:[#allocation4 + $0x3e8] sm:$0xff]
    %v729 = vld [vmem:[#allocation4 + $0x3f0] sm:$0xff]
    %v730 = vld [vmem:[#allocation4 + $0x3f8] sm:$0xff]
    %v731 = vld [vmem:[%s4] sm:$0xf]
    %v733 = vperm.slane %v731, 0
    %v734 = vperm.slane %v731, 1
    %v735 = vperm.slane %v731, 2
    %v736 = vperm.slane %v731, 3
    %v869 = vunpack.c.l.b16 %v603
    %v870 = vunpack.c.h.b16 %v603
    %v871 = vunpack.c.l.b16 %v604
    %v872 = vunpack.c.h.b16 %v604
    %v873 = vunpack.c.l.b16 %v605
    %v874 = vunpack.c.h.b16 %v605
    %v875 = vunpack.c.l.b16 %v606
    %v876 = vunpack.c.h.b16 %v606
    %v877 = vunpack.c.l.b16 %v607
    %v878 = vunpack.c.h.b16 %v607
    %v879 = vunpack.c.l.b16 %v608
    %v880 = vunpack.c.h.b16 %v608
    %v881 = vunpack.c.l.b16 %v609
    %v882 = vunpack.c.h.b16 %v609
    %v883 = vunpack.c.l.b16 %v610
    %v884 = vunpack.c.h.b16 %v610
    %v885 = vunpack.c.l.b16 %v611
    %v886 = vunpack.c.h.b16 %v611
    %v887 = vunpack.c.l.b16 %v612
    %v888 = vunpack.c.h.b16 %v612
    %v889 = vunpack.c.l.b16 %v613
    %v890 = vunpack.c.h.b16 %v613
    %v891 = vunpack.c.l.b16 %v614
    %v892 = vunpack.c.h.b16 %v614
    %v893 = vunpack.c.l.b16 %v615
    %v894 = vunpack.c.h.b16 %v615
    %v895 = vunpack.c.l.b16 %v616
    %v896 = vunpack.c.h.b16 %v616
    %v897 = vunpack.c.l.b16 %v617
    %v898 = vunpack.c.h.b16 %v617
    %v899 = vunpack.c.l.b16 %v618
    %v900 = vunpack.c.h.b16 %v618
    %v901 = vunpack.c.l.b16 %v619
    %v902 = vunpack.c.h.b16 %v619
    %v903 = vunpack.c.l.b16 %v620
    %v904 = vunpack.c.h.b16 %v620
    %v905 = vunpack.c.l.b16 %v621
    %v906 = vunpack.c.h.b16 %v621
    %v907 = vunpack.c.l.b16 %v622
    %v908 = vunpack.c.h.b16 %v622
    %v909 = vunpack.c.l.b16 %v623
    %v910 = vunpack.c.h.b16 %v623
    %v911 = vunpack.c.l.b16 %v624
    %v912 = vunpack.c.h.b16 %v624
    %v913 = vunpack.c.l.b16 %v625
    %v914 = vunpack.c.h.b16 %v625
    %v915 = vunpack.c.l.b16 %v626
    %v916 = vunpack.c.h.b16 %v626
    %v917 = vunpack.c.l.b16 %v627
    %v918 = vunpack.c.h.b16 %v627
    %v919 = vunpack.c.l.b16 %v628
    %v920 = vunpack.c.h.b16 %v628
    %v921 = vunpack.c.l.b16 %v629
    %v922 = vunpack.c.h.b16 %v629
    %v923 = vunpack.c.l.b16 %v630
    %v924 = vunpack.c.h.b16 %v630
    %v925 = vunpack.c.l.b16 %v631
    %v926 = vunpack.c.h.b16 %v631
    %v927 = vunpack.c.l.b16 %v632
    %v928 = vunpack.c.h.b16 %v632
    %v929 = vunpack.c.l.b16 %v633
    %v930 = vunpack.c.h.b16 %v633
    %v931 = vunpack.c.l.b16 %v634
    %v932 = vunpack.c.h.b16 %v634
    %v933 = vunpack.c.l.b16 %v635
    %v934 = vunpack.c.h.b16 %v635
    %v935 = vunpack.c.l.b16 %v636
    %v936 = vunpack.c.h.b16 %v636
    %v937 = vunpack.c.l.b16 %v637
    %v938 = vunpack.c.h.b16 %v637
    %v939 = vunpack.c.l.b16 %v638
    %v940 = vunpack.c.h.b16 %v638
    %v941 = vunpack.c.l.b16 %v639
    %v942 = vunpack.c.h.b16 %v639
    %v943 = vunpack.c.l.b16 %v640
    %v944 = vunpack.c.h.b16 %v640
    %v945 = vunpack.c.l.b16 %v641
    %v946 = vunpack.c.h.b16 %v641
    %v947 = vunpack.c.l.b16 %v642
    %v948 = vunpack.c.h.b16 %v642
    %v949 = vunpack.c.l.b16 %v643
    %v950 = vunpack.c.h.b16 %v643
    %v951 = vunpack.c.l.b16 %v644
    %v952 = vunpack.c.h.b16 %v644
    %v953 = vunpack.c.l.b16 %v645
    %v954 = vunpack.c.h.b16 %v645
    %v955 = vunpack.c.l.b16 %v646
    %v956 = vunpack.c.h.b16 %v646
    %v957 = vunpack.c.l.b16 %v647
    %v958 = vunpack.c.h.b16 %v647
    %v959 = vunpack.c.l.b16 %v648
    %v960 = vunpack.c.h.b16 %v648
    %v961 = vunpack.c.l.b16 %v649
    %v962 = vunpack.c.h.b16 %v649
    %v963 = vunpack.c.l.b16 %v650
    %v964 = vunpack.c.h.b16 %v650
    %v965 = vunpack.c.l.b16 %v651
    %v966 = vunpack.c.h.b16 %v651
    %v967 = vunpack.c.l.b16 %v652
    %v968 = vunpack.c.h.b16 %v652
    %v969 = vunpack.c.l.b16 %v653
    %v970 = vunpack.c.h.b16 %v653
    %v971 = vunpack.c.l.b16 %v654
    %v972 = vunpack.c.h.b16 %v654
    %v973 = vunpack.c.l.b16 %v655
    %v974 = vunpack.c.h.b16 %v655
    %v975 = vunpack.c.l.b16 %v656
    %v976 = vunpack.c.h.b16 %v656
    %v977 = vunpack.c.l.b16 %v657
    %v978 = vunpack.c.h.b16 %v657
    %v979 = vunpack.c.l.b16 %v658
    %v980 = vunpack.c.h.b16 %v658
    %v981 = vunpack.c.l.b16 %v659
    %v982 = vunpack.c.h.b16 %v659
    %v983 = vunpack.c.l.b16 %v660
    %v984 = vunpack.c.h.b16 %v660
    %v985 = vunpack.c.l.b16 %v661
    %v986 = vunpack.c.h.b16 %v661
    %v987 = vunpack.c.l.b16 %v662
    %v988 = vunpack.c.h.b16 %v662
    %v989 = vunpack.c.l.b16 %v663
    %v990 = vunpack.c.h.b16 %v663
    %v991 = vunpack.c.l.b16 %v664
    %v992 = vunpack.c.h.b16 %v664
    %v993 = vunpack.c.l.b16 %v665
    %v994 = vunpack.c.h.b16 %v665
    %v995 = vunpack.c.l.b16 %v666
    %v996 = vunpack.c.h.b16 %v666
    %v997 = vunpack.c.l.b16 %v667
    %v998 = vunpack.c.h.b16 %v667
    %v999 = vunpack.c.l.b16 %v668
    %v1000 = vunpack.c.h.b16 %v668
    %v1001 = vunpack.c.l.b16 %v669
    %v1002 = vunpack.c.h.b16 %v669
    %v1003 = vunpack.c.l.b16 %v670
    %v1004 = vunpack.c.h.b16 %v670
    %v1005 = vunpack.c.l.b16 %v671
    %v1006 = vunpack.c.h.b16 %v671
    %v1007 = vunpack.c.l.b16 %v672
    %v1008 = vunpack.c.h.b16 %v672
    %v1009 = vunpack.c.l.b16 %v673
    %v1010 = vunpack.c.h.b16 %v673
    %v1011 = vunpack.c.l.b16 %v674
    %v1012 = vunpack.c.h.b16 %v674
    %v1013 = vunpack.c.l.b16 %v675
    %v1014 = vunpack.c.h.b16 %v675
    %v1015 = vunpack.c.l.b16 %v676
    %v1016 = vunpack.c.h.b16 %v676
    %v1017 = vunpack.c.l.b16 %v677
    %v1018 = vunpack.c.h.b16 %v677
    %v1019 = vunpack.c.l.b16 %v678
    %v1020 = vunpack.c.h.b16 %v678
    %v1021 = vunpack.c.l.b16 %v679
    %v1022 = vunpack.c.h.b16 %v679
    %v1023 = vunpack.c.l.b16 %v680
    %v1024 = vunpack.c.h.b16 %v680
    %v1025 = vunpack.c.l.b16 %v681
    %v1026 = vunpack.c.h.b16 %v681
    %v1027 = vunpack.c.l.b16 %v682
    %v1028 = vunpack.c.h.b16 %v682
    %v1029 = vunpack.c.l.b16 %v683
    %v1030 = vunpack.c.h.b16 %v683
    %v1031 = vunpack.c.l.b16 %v684
    %v1032 = vunpack.c.h.b16 %v684
    %v1033 = vunpack.c.l.b16 %v685
    %v1034 = vunpack.c.h.b16 %v685
    %v1035 = vunpack.c.l.b16 %v686
    %v1036 = vunpack.c.h.b16 %v686
    %v1037 = vunpack.c.l.b16 %v687
    %v1038 = vunpack.c.h.b16 %v687
    %v1039 = vunpack.c.l.b16 %v688
    %v1040 = vunpack.c.h.b16 %v688
    %v1041 = vunpack.c.l.b16 %v689
    %v1042 = vunpack.c.h.b16 %v689
    %v1043 = vunpack.c.l.b16 %v690
    %v1044 = vunpack.c.h.b16 %v690
    %v1045 = vunpack.c.l.b16 %v691
    %v1046 = vunpack.c.h.b16 %v691
    %v1047 = vunpack.c.l.b16 %v692
    %v1048 = vunpack.c.h.b16 %v692
    %v1049 = vunpack.c.l.b16 %v693
    %v1050 = vunpack.c.h.b16 %v693
    %v1051 = vunpack.c.l.b16 %v694
    %v1052 = vunpack.c.h.b16 %v694
    %v1053 = vunpack.c.l.b16 %v695
    %v1054 = vunpack.c.h.b16 %v695
    %v1055 = vunpack.c.l.b16 %v696
    %v1056 = vunpack.c.h.b16 %v696
    %v1057 = vunpack.c.l.b16 %v697
    %v1058 = vunpack.c.h.b16 %v697
    %v1059 = vunpack.c.l.b16 %v698
    %v1060 = vunpack.c.h.b16 %v698
    %v1061 = vunpack.c.l.b16 %v699
    %v1062 = vunpack.c.h.b16 %v699
    %v1063 = vunpack.c.l.b16 %v700
    %v1064 = vunpack.c.h.b16 %v700
    %v1065 = vunpack.c.l.b16 %v701
    %v1066 = vunpack.c.h.b16 %v701
    %v1067 = vunpack.c.l.b16 %v702
    %v1068 = vunpack.c.h.b16 %v702
    %v1069 = vunpack.c.l.b16 %v703
    %v1070 = vunpack.c.h.b16 %v703
    %v1071 = vunpack.c.l.b16 %v704
    %v1072 = vunpack.c.h.b16 %v704
    %v1073 = vunpack.c.l.b16 %v705
    %v1074 = vunpack.c.h.b16 %v705
    %v1075 = vunpack.c.l.b16 %v706
    %v1076 = vunpack.c.h.b16 %v706
    %v1077 = vunpack.c.l.b16 %v707
    %v1078 = vunpack.c.h.b16 %v707
    %v1079 = vunpack.c.l.b16 %v708
    %v1080 = vunpack.c.h.b16 %v708
    %v1081 = vunpack.c.l.b16 %v709
    %v1082 = vunpack.c.h.b16 %v709
    %v1083 = vunpack.c.l.b16 %v710
    %v1084 = vunpack.c.h.b16 %v710
    %v1085 = vunpack.c.l.b16 %v711
    %v1086 = vunpack.c.h.b16 %v711
    %v1087 = vunpack.c.l.b16 %v712
    %v1088 = vunpack.c.h.b16 %v712
    %v1089 = vunpack.c.l.b16 %v713
    %v1090 = vunpack.c.h.b16 %v713
    %v1091 = vunpack.c.l.b16 %v714
    %v1092 = vunpack.c.h.b16 %v714
    %v1093 = vunpack.c.l.b16 %v715
    %v1094 = vunpack.c.h.b16 %v715
    %v1095 = vunpack.c.l.b16 %v716
    %v1096 = vunpack.c.h.b16 %v716
    %v1097 = vunpack.c.l.b16 %v717
    %v1098 = vunpack.c.h.b16 %v717
    %v1099 = vunpack.c.l.b16 %v718
    %v1100 = vunpack.c.h.b16 %v718
    %v1101 = vunpack.c.l.b16 %v719
    %v1102 = vunpack.c.h.b16 %v719
    %v1103 = vunpack.c.l.b16 %v720
    %v1104 = vunpack.c.h.b16 %v720
    %v1105 = vunpack.c.l.b16 %v721
    %v1106 = vunpack.c.h.b16 %v721
    %v1107 = vunpack.c.l.b16 %v722
    %v1108 = vunpack.c.h.b16 %v722
    %v1109 = vunpack.c.l.b16 %v723
    %v1110 = vunpack.c.h.b16 %v723
    %v1111 = vunpack.c.l.b16 %v724
    %v1112 = vunpack.c.h.b16 %v724
    %v1113 = vunpack.c.l.b16 %v725
    %v1114 = vunpack.c.h.b16 %v725
    %v1115 = vunpack.c.l.b16 %v726
    %v1116 = vunpack.c.h.b16 %v726
    %v1117 = vunpack.c.l.b16 %v727
    %v1118 = vunpack.c.h.b16 %v727
    %v1119 = vunpack.c.l.b16 %v728
    %v1120 = vunpack.c.h.b16 %v728
    %v1121 = vunpack.c.l.b16 %v729
    %v1122 = vunpack.c.h.b16 %v729
    %v1123 = vunpack.c.l.b16 %v730
    %v1124 = vunpack.c.h.b16 %v730
    %v1125 = vpack.c.b16 %v873, %v869
    %v1126 = vpack.c.b16 %v874, %v870
    %v1127 = vpack.c.b16 %v875, %v871
    %v1128 = vpack.c.b16 %v876, %v872
    %v1129 = vpack.c.b16 %v881, %v877
    %v1130 = vpack.c.b16 %v882, %v878
    %v1131 = vpack.c.b16 %v883, %v879
    %v1132 = vpack.c.b16 %v884, %v880
    %v1133 = vpack.c.b16 %v889, %v885
    %v1134 = vpack.c.b16 %v890, %v886
    %v1135 = vpack.c.b16 %v891, %v887
    %v1136 = vpack.c.b16 %v892, %v888
    %v1137 = vpack.c.b16 %v897, %v893
    %v1138 = vpack.c.b16 %v898, %v894
    %v1139 = vpack.c.b16 %v899, %v895
    %v1140 = vpack.c.b16 %v900, %v896
    %v1141 = vpack.c.b16 %v905, %v901
    %v1142 = vpack.c.b16 %v906, %v902
    %v1143 = vpack.c.b16 %v907, %v903
    %v1144 = vpack.c.b16 %v908, %v904
    %v1145 = vpack.c.b16 %v913, %v909
    %v1146 = vpack.c.b16 %v914, %v910
    %v1147 = vpack.c.b16 %v915, %v911
    %v1148 = vpack.c.b16 %v916, %v912
    %v1149 = vpack.c.b16 %v921, %v917
    %v1150 = vpack.c.b16 %v922, %v918
    %v1151 = vpack.c.b16 %v923, %v919
    %v1152 = vpack.c.b16 %v924, %v920
    %v1153 = vpack.c.b16 %v929, %v925
    %v1154 = vpack.c.b16 %v930, %v926
    %v1155 = vpack.c.b16 %v931, %v927
    %v1156 = vpack.c.b16 %v932, %v928
    %v1157 = vpack.c.b16 %v937, %v933
    %v1158 = vpack.c.b16 %v938, %v934
    %v1159 = vpack.c.b16 %v939, %v935
    %v1160 = vpack.c.b16 %v940, %v936
    %v1161 = vpack.c.b16 %v945, %v941
    %v1162 = vpack.c.b16 %v946, %v942
    %v1163 = vpack.c.b16 %v947, %v943
    %v1164 = vpack.c.b16 %v948, %v944
    %v1165 = vpack.c.b16 %v953, %v949
    %v1166 = vpack.c.b16 %v954, %v950
    %v1167 = vpack.c.b16 %v955, %v951
    %v1168 = vpack.c.b16 %v956, %v952
    %v1169 = vpack.c.b16 %v961, %v957
    %v1170 = vpack.c.b16 %v962, %v958
    %v1171 = vpack.c.b16 %v963, %v959
    %v1172 = vpack.c.b16 %v964, %v960
    %v1173 = vpack.c.b16 %v969, %v965
    %v1174 = vpack.c.b16 %v970, %v966
    %v1175 = vpack.c.b16 %v971, %v967
    %v1176 = vpack.c.b16 %v972, %v968
    %v1177 = vpack.c.b16 %v977, %v973
    %v1178 = vpack.c.b16 %v978, %v974
    %v1179 = vpack.c.b16 %v979, %v975
    %v1180 = vpack.c.b16 %v980, %v976
    %v1181 = vpack.c.b16 %v985, %v981
    %v1182 = vpack.c.b16 %v986, %v982
    %v1183 = vpack.c.b16 %v987, %v983
    %v1184 = vpack.c.b16 %v988, %v984
    %v1185 = vpack.c.b16 %v993, %v989
    %v1186 = vpack.c.b16 %v994, %v990
    %v1187 = vpack.c.b16 %v995, %v991
    %v1188 = vpack.c.b16 %v996, %v992
    %v1189 = vpack.c.b16 %v1001, %v997
    %v1190 = vpack.c.b16 %v1002, %v998
    %v1191 = vpack.c.b16 %v1003, %v999
    %v1192 = vpack.c.b16 %v1004, %v1000
    %v1193 = vpack.c.b16 %v1009, %v1005
    %v1194 = vpack.c.b16 %v1010, %v1006
    %v1195 = vpack.c.b16 %v1011, %v1007
    %v1196 = vpack.c.b16 %v1012, %v1008
    %v1197 = vpack.c.b16 %v1017, %v1013
    %v1198 = vpack.c.b16 %v1018, %v1014
    %v1199 = vpack.c.b16 %v1019, %v1015
    %v1200 = vpack.c.b16 %v1020, %v1016
    %v1201 = vpack.c.b16 %v1025, %v1021
    %v1202 = vpack.c.b16 %v1026, %v1022
    %v1203 = vpack.c.b16 %v1027, %v1023
    %v1204 = vpack.c.b16 %v1028, %v1024
    %v1205 = vpack.c.b16 %v1033, %v1029
    %v1206 = vpack.c.b16 %v1034, %v1030
    %v1207 = vpack.c.b16 %v1035, %v1031
    %v1208 = vpack.c.b16 %v1036, %v1032
    %v1209 = vpack.c.b16 %v1041, %v1037
    %v1210 = vpack.c.b16 %v1042, %v1038
    %v1211 = vpack.c.b16 %v1043, %v1039
    %v1212 = vpack.c.b16 %v1044, %v1040
    %v1213 = vpack.c.b16 %v1049, %v1045
    %v1214 = vpack.c.b16 %v1050, %v1046
    %v1215 = vpack.c.b16 %v1051, %v1047
    %v1216 = vpack.c.b16 %v1052, %v1048
    %v1217 = vpack.c.b16 %v1057, %v1053
    %v1218 = vpack.c.b16 %v1058, %v1054
    %v1219 = vpack.c.b16 %v1059, %v1055
    %v1220 = vpack.c.b16 %v1060, %v1056
    %v1221 = vpack.c.b16 %v1065, %v1061
    %v1222 = vpack.c.b16 %v1066, %v1062
    %v1223 = vpack.c.b16 %v1067, %v1063
    %v1224 = vpack.c.b16 %v1068, %v1064
    %v1225 = vpack.c.b16 %v1073, %v1069
    %v1226 = vpack.c.b16 %v1074, %v1070
    %v1227 = vpack.c.b16 %v1075, %v1071
    %v1228 = vpack.c.b16 %v1076, %v1072
    %v1229 = vpack.c.b16 %v1081, %v1077
    %v1230 = vpack.c.b16 %v1082, %v1078
    %v1231 = vpack.c.b16 %v1083, %v1079
    %v1232 = vpack.c.b16 %v1084, %v1080
    %v1233 = vpack.c.b16 %v1089, %v1085
    %v1234 = vpack.c.b16 %v1090, %v1086
    %v1235 = vpack.c.b16 %v1091, %v1087
    %v1236 = vpack.c.b16 %v1092, %v1088
    %v1237 = vpack.c.b16 %v1097, %v1093
    %v1238 = vpack.c.b16 %v1098, %v1094
    %v1239 = vpack.c.b16 %v1099, %v1095
    %v1240 = vpack.c.b16 %v1100, %v1096
    %v1241 = vpack.c.b16 %v1105, %v1101
    %v1242 = vpack.c.b16 %v1106, %v1102
    %v1243 = vpack.c.b16 %v1107, %v1103
    %v1244 = vpack.c.b16 %v1108, %v1104
    %v1245 = vpack.c.b16 %v1113, %v1109
    %v1246 = vpack.c.b16 %v1114, %v1110
    %v1247 = vpack.c.b16 %v1115, %v1111
    %v1248 = vpack.c.b16 %v1116, %v1112
    %v1249 = vpack.c.b16 %v1121, %v1117
    %v1250 = vpack.c.b16 %v1122, %v1118
    %v1251 = vpack.c.b16 %v1123, %v1119
    %v1252 = vpack.c.b16 %v1124, %v1120
    %1381 = vmatpush.bf16.msra.mxu0 %v1153
    %1382 = vmatpush.bf16.msra.mxu0 %v1149
    %1383 = vmatpush.bf16.msra.mxu0 %v1145
    %1384 = vmatpush.bf16.msra.mxu0 %v1141
    %1385 = vmatpush.bf16.msra.mxu0 %v1137
    %1386 = vmatpush.bf16.msra.mxu0 %v1133
    %1387 = vmatpush.bf16.msra.mxu0 %v1129
    %1388 = vmatpush.bf16.msra.mxu0 %v1125
    %1389 = vmatmul.bf16.gmra.mxu0 %v599
    %v1390 = vpop.f32.mrf.mxu0
    %v1391 = vadd.f32 %v733, %v1390
    %v1392 = vpop.f32.mrf.mxu0
    %v1393 = vadd.f32 %v733, %v1392
    %1394 = vdwg.mxu0
    %1395 = vmatpush.bf16.msra.mxu0 %v1185
    %1396 = vmatpush.bf16.msra.mxu0 %v1181
    %1397 = vmatpush.bf16.msra.mxu0 %v1177
    %1398 = vmatpush.bf16.msra.mxu0 %v1173
    %1399 = vmatpush.bf16.msra.mxu0 %v1169
    %1400 = vmatpush.bf16.msra.mxu0 %v1165
    %1401 = vmatpush.bf16.msra.mxu0 %v1161
    %1402 = vmatpush.bf16.msra.mxu0 %v1157
    %1403 = vmatmul.bf16.gmra.mxu0 %v600
    %v1404 = vpop.f32.mrf.mxu0
    %v1405 = vadd.f32 %v1391, %v1404
    %v1406 = vpop.f32.mrf.mxu0
    %v1407 = vadd.f32 %v1393, %v1406
    %1408 = vdwg.mxu0
    %1409 = vmatpush.bf16.msra.mxu0 %v1217
    %1410 = vmatpush.bf16.msra.mxu0 %v1213
    %1411 = vmatpush.bf16.msra.mxu0 %v1209
    %1412 = vmatpush.bf16.msra.mxu0 %v1205
    %1413 = vmatpush.bf16.msra.mxu0 %v1201
    %1414 = vmatpush.bf16.msra.mxu0 %v1197
    %1415 = vmatpush.bf16.msra.mxu0 %v1193
    %1416 = vmatpush.bf16.msra.mxu0 %v1189
    %1417 = vmatmul.bf16.gmra.mxu0 %v601
    %v1418 = vpop.f32.mrf.mxu0
    %v1419 = vadd.f32 %v1405, %v1418
    %v1420 = vpop.f32.mrf.mxu0
    %v1421 = vadd.f32 %v1407, %v1420
    %1422 = vdwg.mxu0
    %1423 = vmatpush.bf16.msra.mxu0 %v1249
    %1424 = vmatpush.bf16.msra.mxu0 %v1245
    %1425 = vmatpush.bf16.msra.mxu0 %v1241
    %1426 = vmatpush.bf16.msra.mxu0 %v1237
    %1427 = vmatpush.bf16.msra.mxu0 %v1233
    %1428 = vmatpush.bf16.msra.mxu0 %v1229
    %1429 = vmatpush.bf16.msra.mxu0 %v1225
    %1430 = vmatpush.bf16.msra.mxu0 %v1221
    %1431 = vmatmul.bf16.gmra.mxu0 %v602
    %v1432 = vpop.f32.mrf.mxu0
    %v1433 = vadd.f32 %v1419, %v1432
    %v1434 = vpop.f32.mrf.mxu0
    %v1435 = vadd.f32 %v1421, %v1434
    %1436 = vdwg.mxu0
    %1437 = vmatpush.bf16.msra.mxu0 %v1154
    %1438 = vmatpush.bf16.msra.mxu0 %v1150
    %1439 = vmatpush.bf16.msra.mxu0 %v1146
    %1440 = vmatpush.bf16.msra.mxu0 %v1142
    %1441 = vmatpush.bf16.msra.mxu0 %v1138
    %1442 = vmatpush.bf16.msra.mxu0 %v1134
    %1443 = vmatpush.bf16.msra.mxu0 %v1130
    %1444 = vmatpush.bf16.msra.mxu0 %v1126
    %1445 = vmatmul.bf16.gmra.mxu0 %v599
    %v1446 = vpop.f32.mrf.mxu0
    %v1447 = vadd.f32 %v734, %v1446
    %v1448 = vpop.f32.mrf.mxu0
    %v1449 = vadd.f32 %v734, %v1448
    %1450 = vdwg.mxu0
    %1451 = vmatpush.bf16.msra.mxu0 %v1186
    %1452 = vmatpush.bf16.msra.mxu0 %v1182
    %1453 = vmatpush.bf16.msra.mxu0 %v1178
    %1454 = vmatpush.bf16.msra.mxu0 %v1174
    %1455 = vmatpush.bf16.msra.mxu0 %v1170
    %1456 = vmatpush.bf16.msra.mxu0 %v1166
    %1457 = vmatpush.bf16.msra.mxu0 %v1162
    %1458 = vmatpush.bf16.msra.mxu0 %v1158
    %1459 = vmatmul.bf16.gmra.mxu0 %v600
    %v1460 = vpop.f32.mrf.mxu0
    %v1461 = vadd.f32 %v1447, %v1460
    %v1462 = vpop.f32.mrf.mxu0
    %v1463 = vadd.f32 %v1449, %v1462
    %1464 = vdwg.mxu0
    %1465 = vmatpush.bf16.msra.mxu0 %v1218
    %1466 = vmatpush.bf16.msra.mxu0 %v1214
    %1467 = vmatpush.bf16.msra.mxu0 %v1210
    %1468 = vmatpush.bf16.msra.mxu0 %v1206
    %1469 = vmatpush.bf16.msra.mxu0 %v1202
    %1470 = vmatpush.bf16.msra.mxu0 %v1198
    %1471 = vmatpush.bf16.msra.mxu0 %v1194
    %1472 = vmatpush.bf16.msra.mxu0 %v1190
    %1473 = vmatmul.bf16.gmra.mxu0 %v601
    %v1474 = vpop.f32.mrf.mxu0
    %v1475 = vadd.f32 %v1461, %v1474
    %v1476 = vpop.f32.mrf.mxu0
    %v1477 = vadd.f32 %v1463, %v1476
    %1478 = vdwg.mxu0
    %1479 = vmatpush.bf16.msra.mxu0 %v1250
    %1480 = vmatpush.bf16.msra.mxu0 %v1246
    %1481 = vmatpush.bf16.msra.mxu0 %v1242
    %1482 = vmatpush.bf16.msra.mxu0 %v1238
    %1483 = vmatpush.bf16.msra.mxu0 %v1234
    %1484 = vmatpush.bf16.msra.mxu0 %v1230
    %1485 = vmatpush.bf16.msra.mxu0 %v1226
    %1486 = vmatpush.bf16.msra.mxu0 %v1222
    %1487 = vmatmul.bf16.gmra.mxu0 %v602
    %v1488 = vpop.f32.mrf.mxu0
    %v1489 = vadd.f32 %v1475, %v1488
    %v1490 = vpop.f32.mrf.mxu0
    %v1491 = vadd.f32 %v1477, %v1490
    %1492 = vdwg.mxu0
    %1493 = vmatpush.bf16.msra.mxu0 %v1155
    %1494 = vmatpush.bf16.msra.mxu0 %v1151
    %1495 = vmatpush.bf16.msra.mxu0 %v1147
    %1496 = vmatpush.bf16.msra.mxu0 %v1143
    %1497 = vmatpush.bf16.msra.mxu0 %v1139
    %1498 = vmatpush.bf16.msra.mxu0 %v1135
    %1499 = vmatpush.bf16.msra.mxu0 %v1131
    %1500 = vmatpush.bf16.msra.mxu0 %v1127
    %1501 = vmatmul.bf16.gmra.mxu0 %v599
    %v1502 = vpop.f32.mrf.mxu0
    %v1503 = vadd.f32 %v735, %v1502
    %v1504 = vpop.f32.mrf.mxu0
    %v1505 = vadd.f32 %v735, %v1504
    %1506 = vdwg.mxu0
    %1507 = vmatpush.bf16.msra.mxu0 %v1187
    %1508 = vmatpush.bf16.msra.mxu0 %v1183
    %1509 = vmatpush.bf16.msra.mxu0 %v1179
    %1510 = vmatpush.bf16.msra.mxu0 %v1175
    %1511 = vmatpush.bf16.msra.mxu0 %v1171
    %1512 = vmatpush.bf16.msra.mxu0 %v1167
    %1513 = vmatpush.bf16.msra.mxu0 %v1163
    %1514 = vmatpush.bf16.msra.mxu0 %v1159
    %1515 = vmatmul.bf16.gmra.mxu0 %v600
    %v1516 = vpop.f32.mrf.mxu0
    %v1517 = vadd.f32 %v1503, %v1516
    %v1518 = vpop.f32.mrf.mxu0
    %v1519 = vadd.f32 %v1505, %v1518
    %1520 = vdwg.mxu0
    %1521 = vmatpush.bf16.msra.mxu0 %v1219
    %1522 = vmatpush.bf16.msra.mxu0 %v1215
    %1523 = vmatpush.bf16.msra.mxu0 %v1211
    %1524 = vmatpush.bf16.msra.mxu0 %v1207
    %1525 = vmatpush.bf16.msra.mxu0 %v1203
    %1526 = vmatpush.bf16.msra.mxu0 %v1199
    %1527 = vmatpush.bf16.msra.mxu0 %v1195
    %1528 = vmatpush.bf16.msra.mxu0 %v1191
    %1529 = vmatmul.bf16.gmra.mxu0 %v601
    %v1530 = vpop.f32.mrf.mxu0
    %v1531 = vadd.f32 %v1517, %v1530
    %v1532 = vpop.f32.mrf.mxu0
    %v1533 = vadd.f32 %v1519, %v1532
    %1534 = vdwg.mxu0
    %1535 = vmatpush.bf16.msra.mxu0 %v1251
    %1536 = vmatpush.bf16.msra.mxu0 %v1247
    %1537 = vmatpush.bf16.msra.mxu0 %v1243
    %1538 = vmatpush.bf16.msra.mxu0 %v1239
    %1539 = vmatpush.bf16.msra.mxu0 %v1235
    %1540 = vmatpush.bf16.msra.mxu0 %v1231
    %1541 = vmatpush.bf16.msra.mxu0 %v1227
    %1542 = vmatpush.bf16.msra.mxu0 %v1223
    %1543 = vmatmul.bf16.gmra.mxu0 %v602
    %v1544 = vpop.f32.mrf.mxu0
    %v1545 = vadd.f32 %v1531, %v1544
    %v1546 = vpop.f32.mrf.mxu0
    %v1547 = vadd.f32 %v1533, %v1546
    %1548 = vdwg.mxu0
    %1549 = vmatpush.bf16.msra.mxu0 %v1156
    %1550 = vmatpush.bf16.msra.mxu0 %v1152
    %1551 = vmatpush.bf16.msra.mxu0 %v1148
    %1552 = vmatpush.bf16.msra.mxu0 %v1144
    %1553 = vmatpush.bf16.msra.mxu0 %v1140
    %1554 = vmatpush.bf16.msra.mxu0 %v1136
    %1555 = vmatpush.bf16.msra.mxu0 %v1132
    %1556 = vmatpush.bf16.msra.mxu0 %v1128
    %1557 = vmatmul.bf16.gmra.mxu0 %v599
    %v1558 = vpop.f32.mrf.mxu0
    %v1559 = vadd.f32 %v736, %v1558
    %v1560 = vpop.f32.mrf.mxu0
    %v1561 = vadd.f32 %v736, %v1560
    %1562 = vdwg.mxu0
    %1563 = vmatpush.bf16.msra.mxu0 %v1188
    %1564 = vmatpush.bf16.msra.mxu0 %v1184
    %1565 = vmatpush.bf16.msra.mxu0 %v1180
    %1566 = vmatpush.bf16.msra.mxu0 %v1176
    %1567 = vmatpush.bf16.msra.mxu0 %v1172
    %1568 = vmatpush.bf16.msra.mxu0 %v1168
    %1569 = vmatpush.bf16.msra.mxu0 %v1164
    %1570 = vmatpush.bf16.msra.mxu0 %v1160
    %1571 = vmatmul.bf16.gmra.mxu0 %v600
    %v1572 = vpop.f32.mrf.mxu0
    %v1573 = vadd.f32 %v1559, %v1572
    %v1574 = vpop.f32.mrf.mxu0
    %v1575 = vadd.f32 %v1561, %v1574
    %1576 = vdwg.mxu0
    %1577 = vmatpush.bf16.msra.mxu0 %v1220
    %1578 = vmatpush.bf16.msra.mxu0 %v1216
    %1579 = vmatpush.bf16.msra.mxu0 %v1212
    %1580 = vmatpush.bf16.msra.mxu0 %v1208
    %1581 = vmatpush.bf16.msra.mxu0 %v1204
    %1582 = vmatpush.bf16.msra.mxu0 %v1200
    %1583 = vmatpush.bf16.msra.mxu0 %v1196
    %1584 = vmatpush.bf16.msra.mxu0 %v1192
    %1585 = vmatmul.bf16.gmra.mxu0 %v601
    %v1586 = vpop.f32.mrf.mxu0
    %v1587 = vadd.f32 %v1573, %v1586
    %v1588 = vpop.f32.mrf.mxu0
    %v1589 = vadd.f32 %v1575, %v1588
    %1590 = vdwg.mxu0
    %1591 = vmatpush.bf16.msra.mxu0 %v1252
    %1592 = vmatpush.bf16.msra.mxu0 %v1248
    %1593 = vmatpush.bf16.msra.mxu0 %v1244
    %1594 = vmatpush.bf16.msra.mxu0 %v1240
    %1595 = vmatpush.bf16.msra.mxu0 %v1236
    %1596 = vmatpush.bf16.msra.mxu0 %v1232
    %1597 = vmatpush.bf16.msra.mxu0 %v1228
    %1598 = vmatpush.bf16.msra.mxu0 %v1224
    %1599 = vmatmul.bf16.gmra.mxu0 %v602
    %v1600 = vpop.f32.mrf.mxu0
    %v1601 = vadd.f32 %v1587, %v1600
    %v1602 = vpop.f32.mrf.mxu0
    %v1603 = vadd.f32 %v1589, %v1602
    %1604 = vdwg.mxu0
    %v1605 = vmax.f32 %v1433, 0.0
    %v1606 = vmax.f32 %v1489, 0.0
    %v1607 = vmax.f32 %v1545, 0.0
    %v1608 = vmax.f32 %v1601, 0.0
    %v1609 = vmax.f32 %v1435, 0.0
    %v1610 = vmax.f32 %v1491, 0.0
    %v1611 = vmax.f32 %v1547, 0.0
    %v1612 = vmax.f32 %v1603, 0.0
    %v1613 = vpack.c.bf16 %v1609, %v1605
    %v1614 = vpack.c.bf16 %v1610, %v1606
    %v1615 = vpack.c.bf16 %v1611, %v1607
    %v1616 = vpack.c.bf16 %v1612, %v1608
    %v1617 = vld [vmem:[#allocation6] sm:$0xf]
    %v1618 = vld [vmem:[#allocation6 + $0x4] sm:$0xf]
    %v1619 = vld [vmem:[#allocation6 + $0x8] sm:$0xf]
    %v1620 = vld [vmem:[#allocation6 + $0xc] sm:$0xf]
    %v1621 = vld [vmem:[#allocation6 + $0x10] sm:$0xf]
    %v1622 = vld [vmem:[#allocation6 + $0x14] sm:$0xf]
    %v1623 = vld [vmem:[#allocation6 + $0x18] sm:$0xf]
    %v1624 = vld [vmem:[#allocation6 + $0x1c] sm:$0xf]
    %v1625 = vld [vmem:[#allocation6 + $0x20] sm:$0xf]
    %v1626 = vld [vmem:[#allocation6 + $0x24] sm:$0xf]
    %v1627 = vld [vmem:[#allocation6 + $0x28] sm:$0xf]
    %v1628 = vld [vmem:[#allocation6 + $0x2c] sm:$0xf]
    %v1629 = vld [vmem:[#allocation6 + $0x30] sm:$0xf]
    %v1630 = vld [vmem:[#allocation6 + $0x34] sm:$0xf]
    %v1631 = vld [vmem:[#allocation6 + $0x38] sm:$0xf]
    %v1632 = vld [vmem:[#allocation6 + $0x3c] sm:$0xf]
    %v1633 = vld [vmem:[#allocation6 + $0x40] sm:$0xf]
    %v1634 = vld [vmem:[#allocation6 + $0x44] sm:$0xf]
    %v1635 = vld [vmem:[#allocation6 + $0x48] sm:$0xf]
    %v1636 = vld [vmem:[#allocation6 + $0x4c] sm:$0xf]
    %v1637 = vld [vmem:[#allocation6 + $0x50] sm:$0xf]
    %v1638 = vld [vmem:[#allocation6 + $0x54] sm:$0xf]
    %v1639 = vld [vmem:[#allocation6 + $0x58] sm:$0xf]
    %v1640 = vld [vmem:[#allocation6 + $0x5c] sm:$0xf]
    %v1641 = vld [vmem:[#allocation6 + $0x60] sm:$0xf]
    %v1642 = vld [vmem:[#allocation6 + $0x64] sm:$0xf]
    %v1643 = vld [vmem:[#allocation6 + $0x68] sm:$0xf]
    %v1644 = vld [vmem:[#allocation6 + $0x6c] sm:$0xf]
    %v1645 = vld [vmem:[#allocation6 + $0x70] sm:$0xf]
    %v1646 = vld [vmem:[#allocation6 + $0x74] sm:$0xf]
    %v1647 = vld [vmem:[#allocation6 + $0x78] sm:$0xf]
    %v1648 = vld [vmem:[#allocation6 + $0x7c] sm:$0xf]
    %v1649 = vld [vmem:[#allocation6 + $0x80] sm:$0xf]
    %v1650 = vld [vmem:[#allocation6 + $0x84] sm:$0xf]
    %v1651 = vld [vmem:[#allocation6 + $0x88] sm:$0xf]
    %v1652 = vld [vmem:[#allocation6 + $0x8c] sm:$0xf]
    %v1653 = vld [vmem:[#allocation6 + $0x90] sm:$0xf]
    %v1654 = vld [vmem:[#allocation6 + $0x94] sm:$0xf]
    %v1655 = vld [vmem:[#allocation6 + $0x98] sm:$0xf]
    %v1656 = vld [vmem:[#allocation6 + $0x9c] sm:$0xf]
    %v1657 = vld [vmem:[#allocation6 + $0xa0] sm:$0xf]
    %v1658 = vld [vmem:[#allocation6 + $0xa4] sm:$0xf]
    %v1659 = vld [vmem:[#allocation6 + $0xa8] sm:$0xf]
    %v1660 = vld [vmem:[#allocation6 + $0xac] sm:$0xf]
    %v1661 = vld [vmem:[#allocation6 + $0xb0] sm:$0xf]
    %v1662 = vld [vmem:[#allocation6 + $0xb4] sm:$0xf]
    %v1663 = vld [vmem:[#allocation6 + $0xb8] sm:$0xf]
    %v1664 = vld [vmem:[#allocation6 + $0xbc] sm:$0xf]
    %v1665 = vld [vmem:[#allocation6 + $0xc0] sm:$0xf]
    %v1666 = vld [vmem:[#allocation6 + $0xc4] sm:$0xf]
    %v1667 = vld [vmem:[#allocation6 + $0xc8] sm:$0xf]
    %v1668 = vld [vmem:[#allocation6 + $0xcc] sm:$0xf]
    %v1669 = vld [vmem:[#allocation6 + $0xd0] sm:$0xf]
    %v1670 = vld [vmem:[#allocation6 + $0xd4] sm:$0xf]
    %v1671 = vld [vmem:[#allocation6 + $0xd8] sm:$0xf]
    %v1672 = vld [vmem:[#allocation6 + $0xdc] sm:$0xf]
    %v1673 = vld [vmem:[#allocation6 + $0xe0] sm:$0xf]
    %v1674 = vld [vmem:[#allocation6 + $0xe4] sm:$0xf]
    %v1675 = vld [vmem:[#allocation6 + $0xe8] sm:$0xf]
    %v1676 = vld [vmem:[#allocation6 + $0xec] sm:$0xf]
    %v1677 = vld [vmem:[#allocation6 + $0xf0] sm:$0xf]
    %v1678 = vld [vmem:[#allocation6 + $0xf4] sm:$0xf]
    %v1679 = vld [vmem:[#allocation6 + $0xf8] sm:$0xf]
    %v1680 = vld [vmem:[#allocation6 + $0xfc] sm:$0xf]
    %v1681 = vld [vmem:[%s6] sm:$0x1]
    %v1683 = vperm.slane %v1681, 0
    %v1749 = vunpack.c.l.b16 %v1617
    %v1750 = vunpack.c.l.b16 %v1618
    %v1751 = vunpack.c.l.b16 %v1619
    %v1752 = vunpack.c.l.b16 %v1620
    %v1753 = vunpack.c.l.b16 %v1621
    %v1754 = vunpack.c.l.b16 %v1622
    %v1755 = vunpack.c.l.b16 %v1623
    %v1756 = vunpack.c.l.b16 %v1624
    %v1757 = vunpack.c.l.b16 %v1625
    %v1758 = vunpack.c.l.b16 %v1626
    %v1759 = vunpack.c.l.b16 %v1627
    %v1760 = vunpack.c.l.b16 %v1628
    %v1761 = vunpack.c.l.b16 %v1629
    %v1762 = vunpack.c.l.b16 %v1630
    %v1763 = vunpack.c.l.b16 %v1631
    %v1764 = vunpack.c.l.b16 %v1632
    %v1765 = vunpack.c.l.b16 %v1633
    %v1766 = vunpack.c.l.b16 %v1634
    %v1767 = vunpack.c.l.b16 %v1635
    %v1768 = vunpack.c.l.b16 %v1636
    %v1769 = vunpack.c.l.b16 %v1637
    %v1770 = vunpack.c.l.b16 %v1638
    %v1771 = vunpack.c.l.b16 %v1639
    %v1772 = vunpack.c.l.b16 %v1640
    %v1773 = vunpack.c.l.b16 %v1641
    %v1774 = vunpack.c.l.b16 %v1642
    %v1775 = vunpack.c.l.b16 %v1643
    %v1776 = vunpack.c.l.b16 %v1644
    %v1777 = vunpack.c.l.b16 %v1645
    %v1778 = vunpack.c.l.b16 %v1646
    %v1779 = vunpack.c.l.b16 %v1647
    %v1780 = vunpack.c.l.b16 %v1648
    %v1781 = vunpack.c.l.b16 %v1649
    %v1782 = vunpack.c.l.b16 %v1650
    %v1783 = vunpack.c.l.b16 %v1651
    %v1784 = vunpack.c.l.b16 %v1652
    %v1785 = vunpack.c.l.b16 %v1653
    %v1786 = vunpack.c.l.b16 %v1654
    %v1787 = vunpack.c.l.b16 %v1655
    %v1788 = vunpack.c.l.b16 %v1656
    %v1789 = vunpack.c.l.b16 %v1657
    %v1790 = vunpack.c.l.b16 %v1658
    %v1791 = vunpack.c.l.b16 %v1659
    %v1792 = vunpack.c.l.b16 %v1660
    %v1793 = vunpack.c.l.b16 %v1661
    %v1794 = vunpack.c.l.b16 %v1662
    %v1795 = vunpack.c.l.b16 %v1663
    %v1796 = vunpack.c.l.b16 %v1664
    %v1797 = vunpack.c.l.b16 %v1665
    %v1798 = vunpack.c.l.b16 %v1666
    %v1799 = vunpack.c.l.b16 %v1667
    %v1800 = vunpack.c.l.b16 %v1668
    %v1801 = vunpack.c.l.b16 %v1669
    %v1802 = vunpack.c.l.b16 %v1670
    %v1803 = vunpack.c.l.b16 %v1671
    %v1804 = vunpack.c.l.b16 %v1672
    %v1805 = vunpack.c.l.b16 %v1673
    %v1806 = vunpack.c.l.b16 %v1674
    %v1807 = vunpack.c.l.b16 %v1675
    %v1808 = vunpack.c.l.b16 %v1676
    %v1809 = vunpack.c.l.b16 %v1677
    %v1810 = vunpack.c.l.b16 %v1678
    %v1811 = vunpack.c.l.b16 %v1679
    %v1812 = vunpack.c.l.b16 %v1680
    %v1813 = vpack.c.b16 %v1750, %v1749
    %v1814 = vpack.c.b16 %v1752, %v1751
    %v1815 = vpack.c.b16 %v1754, %v1753
    %v1816 = vpack.c.b16 %v1756, %v1755
    %v1817 = vpack.c.b16 %v1758, %v1757
    %v1818 = vpack.c.b16 %v1760, %v1759
    %v1819 = vpack.c.b16 %v1762, %v1761
    %v1820 = vpack.c.b16 %v1764, %v1763
    %v1821 = vpack.c.b16 %v1766, %v1765
    %v1822 = vpack.c.b16 %v1768, %v1767
    %v1823 = vpack.c.b16 %v1770, %v1769
    %v1824 = vpack.c.b16 %v1772, %v1771
    %v1825 = vpack.c.b16 %v1774, %v1773
    %v1826 = vpack.c.b16 %v1776, %v1775
    %v1827 = vpack.c.b16 %v1778, %v1777
    %v1828 = vpack.c.b16 %v1780, %v1779
    %v1829 = vpack.c.b16 %v1782, %v1781
    %v1830 = vpack.c.b16 %v1784, %v1783
    %v1831 = vpack.c.b16 %v1786, %v1785
    %v1832 = vpack.c.b16 %v1788, %v1787
    %v1833 = vpack.c.b16 %v1790, %v1789
    %v1834 = vpack.c.b16 %v1792, %v1791
    %v1835 = vpack.c.b16 %v1794, %v1793
    %v1836 = vpack.c.b16 %v1796, %v1795
    %v1837 = vpack.c.b16 %v1798, %v1797
    %v1838 = vpack.c.b16 %v1800, %v1799
    %v1839 = vpack.c.b16 %v1802, %v1801
    %v1840 = vpack.c.b16 %v1804, %v1803
    %v1841 = vpack.c.b16 %v1806, %v1805
    %v1842 = vpack.c.b16 %v1808, %v1807
    %v1843 = vpack.c.b16 %v1810, %v1809
    %v1844 = vpack.c.b16 %v1812, %v1811
    %1877 = vmatpush.bf16.msra.mxu0 %v1820
    %1878 = vmatpush.bf16.msra.mxu0 %v1819
    %1879 = vmatpush.bf16.msra.mxu0 %v1818
    %1880 = vmatpush.bf16.msra.mxu0 %v1817
    %1881 = vmatpush.bf16.msra.mxu0 %v1816
    %1882 = vmatpush.bf16.msra.mxu0 %v1815
    %1883 = vmatpush.bf16.msra.mxu0 %v1814
    %1884 = vmatpush.bf16.msra.mxu0 %v1813
    %1885 = vmatmul.bf16.gmra.mxu0 %v1613
    %v1886 = vpop.f32.mrf.mxu0
    %v1887 = vadd.f32 %v1683, %v1886
    %v1888 = vpop.f32.mrf.mxu0
    %v1889 = vadd.f32 %v1683, %v1888
    %1890 = vdwg.mxu0
    %1891 = vmatpush.bf16.msra.mxu0 %v1828
    %1892 = vmatpush.bf16.msra.mxu0 %v1827
    %1893 = vmatpush.bf16.msra.mxu0 %v1826
    %1894 = vmatpush.bf16.msra.mxu0 %v1825
    %1895 = vmatpush.bf16.msra.mxu0 %v1824
    %1896 = vmatpush.bf16.msra.mxu0 %v1823
    %1897 = vmatpush.bf16.msra.mxu0 %v1822
    %1898 = vmatpush.bf16.msra.mxu0 %v1821
    %1899 = vmatmul.bf16.gmra.mxu0 %v1614
    %v1900 = vpop.f32.mrf.mxu0
    %v1901 = vadd.f32 %v1887, %v1900
    %v1902 = vpop.f32.mrf.mxu0
    %v1903 = vadd.f32 %v1889, %v1902
    %1904 = vdwg.mxu0
    %1905 = vmatpush.bf16.msra.mxu0 %v1836
    %1906 = vmatpush.bf16.msra.mxu0 %v1835
    %1907 = vmatpush.bf16.msra.mxu0 %v1834
    %1908 = vmatpush.bf16.msra.mxu0 %v1833
    %1909 = vmatpush.bf16.msra.mxu0 %v1832
    %1910 = vmatpush.bf16.msra.mxu0 %v1831
    %1911 = vmatpush.bf16.msra.mxu0 %v1830
    %1912 = vmatpush.bf16.msra.mxu0 %v1829
    %1913 = vmatmul.bf16.gmra.mxu0 %v1615
    %v1914 = vpop.f32.mrf.mxu0
    %v1915 = vadd.f32 %v1901, %v1914
    %v1916 = vpop.f32.mrf.mxu0
    %v1917 = vadd.f32 %v1903, %v1916
    %1918 = vdwg.mxu0
    %1919 = vmatpush.bf16.msra.mxu0 %v1844
    %1920 = vmatpush.bf16.msra.mxu0 %v1843
    %1921 = vmatpush.bf16.msra.mxu0 %v1842
    %1922 = vmatpush.bf16.msra.mxu0 %v1841
    %1923 = vmatpush.bf16.msra.mxu0 %v1840
    %1924 = vmatpush.bf16.msra.mxu0 %v1839
    %1925 = vmatpush.bf16.msra.mxu0 %v1838
    %1926 = vmatpush.bf16.msra.mxu0 %v1837
    %1927 = vmatmul.bf16.gmra.mxu0 %v1616
    %v1928 = vpop.f32.mrf.mxu0
    %v1929 = vadd.f32 %v1915, %v1928
    %v1930 = vpop.f32.mrf.mxu0
    %v1931 = vadd.f32 %v1917, %v1930
    %1932 = vdwg.mxu0
    %v1933 = vmax.f32 %v1929, 0.0
    %v1934 = vmax.f32 %v1931, 0.0
    %v1935 = vpack.c.bf16 %v1933, %v1933
    %v1936 = vpack.c.bf16 %v1934, %v1934
    %1937 = vst [vmem:[%s7] sm:$0xf] %v1935
    %1938 = vst [vmem:[%s7 + $0x4] sm:$0xf] %v1936
    // Predicated region
    $region42: #{mlp_forward.1} parent=1 // pred_check
      _
    $region43: #{mlp_forward.1} parent=1 // pred_check_branch
      %1940 = sbr.rel (0) target = $region45
    $region44: #{mlp_forward.1} parent=1 // pred_region
      _
    $region45: #{mlp_forward.1} parent=1 // pred_fallthru
      _
    // Predicated region
    $region46: #{mlp_forward.1} parent=1 // pred_check
      _
    $region47: #{mlp_forward.1} parent=1 // pred_check_branch
      %1942 = sbr.rel (0) target = $region49
    $region48: #{mlp_forward.1} parent=1 // pred_region
      _
    $region49: #{mlp_forward.1} parent=1 // pred_fallthru
      _
    %1943 = vsyncpa [#allocation3], 1
    %1944 = vsyncpa [#allocation5], 1

</llo_original>
